<compile_context>
chip_gen: v5e
topology: v5e:2x2
jax: 0.10.0
libtpu: 0.0.40
codegen_flags: <defaults>
</compile_context>

<pallas_src>
import jax
import jax.numpy as jnp
from jax.experimental import pallas as pl
from jax.experimental.pallas import tpu as pltpu

D = 512           # mri_feature_dim / out_dim
H = D // 2        # hidden width of attention MLP and classifier heads
C = 3             # num_classes (int branch -> single-task)
NP = 128          # merged lane-dense logits width
HALF = NP // 2    # lane offset of the us-head logits in the merged output


def _round_up(x, m):
    return ((x + m - 1) // m) * m


def _cdiv(a, b):
    return (a + b - 1) // b


def _fusion_kernel(mri_ref, us_ref, wsi_ref, flags_ref,
                   aw1_ref, ab1_ref, aw2r_ref,
                   cw1_ref, cb1_ref, uw1_ref, ub1_ref,
                   w2c_ref, w2u_ref, b2_ref,
                   out_ref):
    # Flag masking: features * available_flags.unsqueeze(1).
    # Upcast once, mask in f32; flags are 0/1 so the bf16 round-trip for the
    # MXU operands below is exact.
    mflag = flags_ref[:, 0:1]                                  # (TB, 1) f32
    uflag = flags_ref[:, 1:2]
    m = mri_ref[...].astype(jnp.float32) * mflag               # (TB, D) f32
    u = us_ref[...].astype(jnp.float32) * uflag
    w = wsi_ref[...].astype(jnp.float32)
    m_bf = m.astype(jnp.bfloat16)                              # masked bf16 operands
    u_bf = u.astype(jnp.bfloat16)
    w_bf = wsi_ref[...]

    aw1 = aw1_ref[...]                                         # (D, H) bf16
    ab1 = ab1_ref[...]                                         # (1, H) f32
    aw2r = aw2r_ref[...]                                       # (1, H) f32

    def modality_score(x_bf):
        h = jnp.maximum(
            jnp.dot(x_bf, aw1, preferred_element_type=jnp.float32) + ab1, 0.0)
        # Second attention layer has out_features=1: do it as a VPU
        # broadcast-mul + lane reduce instead of wasting an MXU pass.
        # attn_b2 shifts all three modality scores of an example by the same
        # constant -> softmax(s + c) == softmax(s), so it is dropped.
        return jnp.sum(h * aw2r, axis=-1, keepdims=True)       # (TB, 1) f32

    s_m = modality_score(m_bf)
    s_u = modality_score(u_bf)
    s_w = modality_score(w_bf)

    # Softmax over the 3 modalities (f32), then weighted sum -> fused features.
    s_max = jnp.maximum(jnp.maximum(s_m, s_u), s_w)
    e_m = jnp.exp(s_m - s_max)
    e_u = jnp.exp(s_u - s_max)
    e_w = jnp.exp(s_w - s_max)
    inv = pl.reciprocal(e_m + e_u + e_w, approx=True)          # EUP slot; ~1e-3 rel
    fused = (e_m * m + e_u * u + e_w * w) * inv                # (TB, D) f32

    # Classifier heads.
    # TODO(synk): Dropout(0.5) is identity at inference; training-mode
    # stochastic masking is not reproduced here.
    hh_c = jnp.maximum(
        jnp.dot(fused.astype(jnp.bfloat16), cw1_ref[...],
                preferred_element_type=jnp.float32) + cb1_ref[...], 0.0)
    hh_u = jnp.maximum(
        jnp.dot(u_bf, uw1_ref[...],
                preferred_element_type=jnp.float32) + ub1_ref[...], 0.0)

    # Merged head-2: cls logits land in lanes [0, C), us logits in
    # [HALF, HALF+C) of one lane-dense 128-wide output (single unmasked store).
    out = (jnp.dot(hh_c.astype(jnp.bfloat16), w2c_ref[...],
                   preferred_element_type=jnp.float32)
           + jnp.dot(hh_u.astype(jnp.bfloat16), w2u_ref[...],
                     preferred_element_type=jnp.float32)
           + b2_ref[...])
    out_ref[...] = out.astype(out_ref.dtype)


def _choose_tiling(B, batch_tile):
    """Adaptive batch tile: multiple of 16 (bf16 sublane pack), padding <16 rows,
    and >=2 grid steps when the batch allows (keeps both v7x TCs busy)."""
    b16 = _round_up(max(B, 1), 16)
    steps = max(1, _cdiv(b16, batch_tile))
    if steps == 1 and b16 >= 32:
        steps = 2
    tb = _round_up(_cdiv(b16, steps), 16)
    return tb, tb * steps, steps


def tumor_classifier_fusion(mri_feat, us_feat, wsi_feat,
                            mri_flag, us_flag, params, *, batch_tile=512):
    """Run the fused attention + classifier heads as one tiled Pallas kernel.

    mri_feat / us_feat / wsi_feat : (B, 512) float32 or bfloat16
    mri_flag / us_flag            : (B, 1)   float32 (0.0 / 1.0)
    """
    B = mri_feat.shape[0]
    TB, pB, steps = _choose_tiling(B, batch_tile)

    def prep_feat(x):
        # TODO(synk): ideally the upstream encoders emit bf16 directly; the
        # cast here only exists because the stand-in features are f32.
        return jnp.pad(x.astype(jnp.bfloat16), ((0, pB - B), (0, 0)))

    mri_p = prep_feat(mri_feat)
    us_p = prep_feat(us_feat)
    wsi_p = prep_feat(wsi_feat)
    flags = jnp.pad(
        jnp.concatenate([mri_flag, us_flag], axis=1).astype(jnp.float32),
        ((0, pB - B), (0, 0)))                                  # (pB, 2)

    # Weight prep: bf16 MXU operands (f32 accumulation), f32 biases.
    # Head-2 weights/biases are merged into one 128-lane block:
    # cls head -> columns [0, C), us head -> columns [HALF, HALF+C).
    aw1 = params["attn_w1"].astype(jnp.bfloat16)                # (D, H)
    ab1 = params["attn_b1"].astype(jnp.float32)                 # (1, H)
    aw2r = params["attn_w2"].reshape(1, H).astype(jnp.float32)  # (1, H)
    cw1 = params["cls_w1"].astype(jnp.bfloat16)                 # (D, H)
    cb1 = params["cls_b1"].astype(jnp.float32)                  # (1, H)
    uw1 = params["us_w1"].astype(jnp.bfloat16)
    ub1 = params["us_b1"].astype(jnp.float32)
    w2c = (jnp.zeros((H, NP), jnp.float32)
           .at[:, 0:C].set(params["cls_w2"]).astype(jnp.bfloat16))
    w2u = (jnp.zeros((H, NP), jnp.float32)
           .at[:, HALF:HALF + C].set(params["us_w2"]).astype(jnp.bfloat16))
    b2 = (jnp.zeros((1, NP), jnp.float32)
          .at[:, 0:C].set(params["cls_b2"])
          .at[:, HALF:HALF + C].set(params["us_b2"]))           # (1, NP) f32

    feat_spec = pl.BlockSpec((TB, D), lambda i: (i, 0))
    flag_spec = pl.BlockSpec((TB, 2), lambda i: (i, 0))
    out_spec = pl.BlockSpec((TB, NP), lambda i: (i, 0))

    def const_spec(arr):
        # Whole weight/bias resident in VMEM across all grid steps
        # (constant index_map -> no per-step re-fetch).
        return pl.BlockSpec(arr.shape, lambda i: (0, 0))

    weights = (aw1, ab1, aw2r, cw1, cb1, uw1, ub1, w2c, w2u, b2)

    grid_spec = pltpu.PrefetchScalarGridSpec(
        num_scalar_prefetch=0,
        grid=(steps,),
        in_specs=[feat_spec, feat_spec, feat_spec, flag_spec]
                 + [const_spec(a) for a in weights],
        out_specs=out_spec,
    )

    merged = pl.pallas_call(
        _fusion_kernel,
        out_shape=jax.ShapeDtypeStruct((pB, NP), jnp.bfloat16),
        grid_spec=grid_spec,
        compiler_params=pltpu.CompilerParams(
            dimension_semantics=("parallel",),
            vmem_limit_bytes=32 * 1024 * 1024),
    )(mri_p, us_p, wsi_p, flags, *weights)

    # Padded rows have garbage logits (zero features but nonzero biases);
    # correctness relies on this [:B] slice.
    logits = merged[:B, 0:C].astype(jnp.float32)
    us_logits = merged[:B, HALF:HALF + C].astype(jnp.float32)
    return logits, us_logits


def _linear_init(key, fan_in, fan_out):
    # PyTorch nn.Linear default: U(-1/sqrt(fan_in), 1/sqrt(fan_in))
    kw, kb = jax.random.split(key)
    bound = 1.0 / (fan_in ** 0.5)
    w = jax.random.uniform(kw, (fan_in, fan_out), jnp.float32, -bound, bound)
    b = jax.random.uniform(kb, (1, fan_out), jnp.float32, -bound, bound)
    return w, b


def make_params(key):
    keys = jax.random.split(key, 6)
    attn_w1, attn_b1 = _linear_init(keys[0], D, H)
    attn_w2, attn_b2 = _linear_init(keys[1], H, 1)
    cls_w1, cls_b1 = _linear_init(keys[2], D, H)
    cls_w2, cls_b2 = _linear_init(keys[3], H, C)
    us_w1, us_b1 = _linear_init(keys[4], D, H)
    us_w2, us_b2 = _linear_init(keys[5], H, C)
    return dict(attn_w1=attn_w1, attn_b1=attn_b1, attn_w2=attn_w2, attn_b2=attn_b2,
                cls_w1=cls_w1, cls_b1=cls_b1, cls_w2=cls_w2, cls_b2=cls_b2,
                us_w1=us_w1, us_b1=us_b1, us_w2=us_w2, us_b2=us_b2)


def reference_forward(mri_feat, us_feat, wsi_feat, mri_flag, us_flag, p):
    """Plain-JAX f32 reference mirroring the PyTorch fusion path (eval mode)."""
    m = mri_feat * mri_flag
    u = us_feat * us_flag
    stacked = jnp.stack((m, u, wsi_feat), axis=1)                  # (B, 3, D)
    h = jax.nn.relu(stacked @ p["attn_w1"] + p["attn_b1"])
    scores = h @ p["attn_w2"] + p["attn_b2"]                       # (B, 3, 1)
    attn = jax.nn.softmax(scores, axis=1)
    fused = jnp.sum(stacked * attn, axis=1)                        # (B, D)

    def head(f, w1, b1, w2, b2):
        return jax.nn.relu(f @ w1 + b1) @ w2 + b2

    logits = head(fused, p["cls_w1"], p["cls_b1"], p["cls_w2"], p["cls_b2"])
    us_logits = head(u, p["us_w1"], p["us_b1"], p["us_w2"], p["us_b2"])
    return logits, us_logits


if __name__ == "__main__":
    key = jax.random.PRNGKey(0)
    k_param, k_mri, k_us, k_wsi = jax.random.split(key, 4)

    B = 2
    params = make_params(k_param)

    # Stand-ins for the (untranslatable) encoder outputs: (B, 512) features.
    mri_feat = jax.random.normal(k_mri, (B, D), jnp.float32)
    us_feat = jax.random.normal(k_us, (B, D), jnp.float32)
    wsi_feat = jax.random.normal(k_wsi, (B, D), jnp.float32)
    # Availability flags (booleans cast to f32, as in `features * flags.unsqueeze(1)`).
    mri_flag = jnp.array([[1.0], [0.0]], jnp.float32)
    us_flag = jnp.array([[1.0], [1.0]], jnp.float32)

    logits, us_logits = tumor_classifier_fusion(
        mri_feat, us_feat, wsi_feat, mri_flag, us_flag, params)
    jax.block_until_ready((logits, us_logits))

    ref_logits, ref_us_logits = reference_forward(
        mri_feat, us_feat, wsi_feat, mri_flag, us_flag, params)

    assert logits.shape == (B, C) and us_logits.shape == (B, C)
    # bf16 inputs / MXU operands / stored logits (f32 accumulation) => loosen
    # tolerance vs the pure-f32 reference.
    assert jnp.allclose(logits, ref_logits, atol=5e-2, rtol=5e-2), (
        float(jnp.max(jnp.abs(logits - ref_logits))))
    assert jnp.allclose(us_logits, ref_us_logits, atol=5e-2, rtol=5e-2), (
        float(jnp.max(jnp.abs(us_logits - ref_us_logits))))

    print("KERNEL_OK")
</pallas_src>

<mosaic_0001>
module attributes {stable_mosaic.version = 11 : i64} {
  func.func @_fusion_kernel(%arg0: i32, %arg1: memref<16x512xbf16, #tpu.memory_space<vmem>>, %arg2: memref<16x512xbf16, #tpu.memory_space<vmem>>, %arg3: memref<16x512xbf16, #tpu.memory_space<vmem>>, %arg4: memref<16x2xf32, #tpu.memory_space<vmem>>, %arg5: memref<512x256xbf16, #tpu.memory_space<vmem>>, %arg6: memref<1x256xf32, #tpu.memory_space<vmem>>, %arg7: memref<1x256xf32, #tpu.memory_space<vmem>>, %arg8: memref<512x256xbf16, #tpu.memory_space<vmem>>, %arg9: memref<1x256xf32, #tpu.memory_space<vmem>>, %arg10: memref<512x256xbf16, #tpu.memory_space<vmem>>, %arg11: memref<1x256xf32, #tpu.memory_space<vmem>>, %arg12: memref<256x128xbf16, #tpu.memory_space<vmem>>, %arg13: memref<256x128xbf16, #tpu.memory_space<vmem>>, %arg14: memref<1x128xf32, #tpu.memory_space<vmem>>, %arg15: memref<16x128xbf16, #tpu.memory_space<vmem>>) attributes {dimension_semantics = [#tpu.dimension_semantics<parallel>], iteration_bounds = array<i64: 1>, scalar_prefetch = 0 : i64, scratch_operands = 0 : i64, tpu.core_type = #tpu.core_type<tc>, window_params = [{transform_indices = @transform_0, window_bounds = array<i64: 16, 512>}, {transform_indices = @transform_1, window_bounds = array<i64: 16, 512>}, {transform_indices = @transform_2, window_bounds = array<i64: 16, 512>}, {transform_indices = @transform_3, window_bounds = array<i64: 16, 2>}, {pipeline_mode = #tpu.pipeline_mode<synchronous>, transform_indices = @transform_4, window_bounds = array<i64: 512, 256>}, {pipeline_mode = #tpu.pipeline_mode<synchronous>, transform_indices = @transform_5, window_bounds = array<i64: 1, 256>}, {pipeline_mode = #tpu.pipeline_mode<synchronous>, transform_indices = @transform_6, window_bounds = array<i64: 1, 256>}, {pipeline_mode = #tpu.pipeline_mode<synchronous>, transform_indices = @transform_7, window_bounds = array<i64: 512, 256>}, {pipeline_mode = #tpu.pipeline_mode<synchronous>, transform_indices = @transform_8, window_bounds = array<i64: 1, 256>}, {pipeline_mode = #tpu.pipeline_mode<synchronous>, transform_indices = @transform_9, window_bounds = array<i64: 512, 256>}, {pipeline_mode = #tpu.pipeline_mode<synchronous>, transform_indices = @transform_10, window_bounds = array<i64: 1, 256>}, {pipeline_mode = #tpu.pipeline_mode<synchronous>, transform_indices = @transform_11, window_bounds = array<i64: 256, 128>}, {pipeline_mode = #tpu.pipeline_mode<synchronous>, transform_indices = @transform_12, window_bounds = array<i64: 256, 128>}, {pipeline_mode = #tpu.pipeline_mode<synchronous>, transform_indices = @transform_13, window_bounds = array<i64: 1, 128>}, {transform_indices = @transform_14, window_bounds = array<i64: 16, 128>}]} {
    %c0 = arith.constant 0 : index
    %c0_0 = arith.constant 0 : index
    %0 = vector.load %arg4[%c0, %c0_0] : memref<16x2xf32, #tpu.memory_space<vmem>>, vector<16x1xf32>
    %c0_1 = arith.constant 0 : index
    %c1 = arith.constant 1 : index
    %1 = vector.load %arg4[%c0_1, %c1] : memref<16x2xf32, #tpu.memory_space<vmem>>, vector<16x1xf32>
    %c0_2 = arith.constant 0 : index
    %c0_3 = arith.constant 0 : index
    %2 = vector.load %arg1[%c0_2, %c0_3] : memref<16x512xbf16, #tpu.memory_space<vmem>>, vector<16x512xbf16>
    %3 = arith.extf %2 : vector<16x512xbf16> to vector<16x512xf32>
    %4 = vector.broadcast %0 : vector<16x1xf32> to vector<16x512xf32>
    %5 = arith.mulf %3, %4 : vector<16x512xf32>
    %c0_4 = arith.constant 0 : index
    %c0_5 = arith.constant 0 : index
    %6 = vector.load %arg2[%c0_4, %c0_5] : memref<16x512xbf16, #tpu.memory_space<vmem>>, vector<16x512xbf16>
    %7 = arith.extf %6 : vector<16x512xbf16> to vector<16x512xf32>
    %8 = vector.broadcast %1 : vector<16x1xf32> to vector<16x512xf32>
    %9 = arith.mulf %7, %8 : vector<16x512xf32>
    %c0_6 = arith.constant 0 : index
    %c0_7 = arith.constant 0 : index
    %10 = vector.load %arg3[%c0_6, %c0_7] : memref<16x512xbf16, #tpu.memory_space<vmem>>, vector<16x512xbf16>
    %11 = arith.extf %10 : vector<16x512xbf16> to vector<16x512xf32>
    %12 = arith.truncf %5 : vector<16x512xf32> to vector<16x512xbf16>
    %13 = arith.truncf %9 : vector<16x512xf32> to vector<16x512xbf16>
    %c0_8 = arith.constant 0 : index
    %c0_9 = arith.constant 0 : index
    %14 = vector.load %arg3[%c0_8, %c0_9] : memref<16x512xbf16, #tpu.memory_space<vmem>>, vector<16x512xbf16>
    %c0_10 = arith.constant 0 : index
    %c0_11 = arith.constant 0 : index
    %15 = vector.load %arg5[%c0_10, %c0_11] : memref<512x256xbf16, #tpu.memory_space<vmem>>, vector<512x256xbf16>
    %c0_12 = arith.constant 0 : index
    %c0_13 = arith.constant 0 : index
    %16 = vector.load %arg6[%c0_12, %c0_13] : memref<1x256xf32, #tpu.memory_space<vmem>>, vector<1x256xf32>
    %c0_14 = arith.constant 0 : index
    %c0_15 = arith.constant 0 : index
    %17 = vector.load %arg7[%c0_14, %c0_15] : memref<1x256xf32, #tpu.memory_space<vmem>>, vector<1x256xf32>
    %cst = arith.constant dense<0.000000e+00> : vector<16x256xf32>
    %18 = tpu.matmul %12, %15, %cst {dimension_numbers = #tpu.dot_dimension_numbers<[1], [0], [0], [1], [0, 0, 1, 1], [], []>} : vector<16x512xbf16>, vector<512x256xbf16>, vector<16x256xf32> -> vector<16x256xf32>
    %19 = vector.broadcast %16 : vector<1x256xf32> to vector<16x256xf32>
    %20 = arith.addf %18, %19 : vector<16x256xf32>
    %cst_16 = arith.constant 0.000000e+00 : f32
    %21 = vector.broadcast %cst_16 : f32 to vector<16x256xf32>
    %22 = arith.maximumf %20, %21 : vector<16x256xf32>
    %23 = vector.broadcast %17 : vector<1x256xf32> to vector<16x256xf32>
    %24 = arith.mulf %22, %23 : vector<16x256xf32>
    %cst_17 = arith.constant dense<0.000000e+00> : vector<16xf32>
    %25 = vector.multi_reduction <add>, %24, %cst_17 [1] : vector<16x256xf32> to vector<16xf32>
    %26 = vector.shape_cast %25 : vector<16xf32> to vector<16x1xf32>
    %cst_18 = arith.constant dense<0.000000e+00> : vector<16x256xf32>
    %27 = tpu.matmul %13, %15, %cst_18 {dimension_numbers = #tpu.dot_dimension_numbers<[1], [0], [0], [1], [0, 0, 1, 1], [], []>} : vector<16x512xbf16>, vector<512x256xbf16>, vector<16x256xf32> -> vector<16x256xf32>
    %28 = vector.broadcast %16 : vector<1x256xf32> to vector<16x256xf32>
    %29 = arith.addf %27, %28 : vector<16x256xf32>
    %cst_19 = arith.constant 0.000000e+00 : f32
    %30 = vector.broadcast %cst_19 : f32 to vector<16x256xf32>
    %31 = arith.maximumf %29, %30 : vector<16x256xf32>
    %32 = vector.broadcast %17 : vector<1x256xf32> to vector<16x256xf32>
    %33 = arith.mulf %31, %32 : vector<16x256xf32>
    %cst_20 = arith.constant dense<0.000000e+00> : vector<16xf32>
    %34 = vector.multi_reduction <add>, %33, %cst_20 [1] : vector<16x256xf32> to vector<16xf32>
    %35 = vector.shape_cast %34 : vector<16xf32> to vector<16x1xf32>
    %cst_21 = arith.constant dense<0.000000e+00> : vector<16x256xf32>
    %36 = tpu.matmul %14, %15, %cst_21 {dimension_numbers = #tpu.dot_dimension_numbers<[1], [0], [0], [1], [0, 0, 1, 1], [], []>} : vector<16x512xbf16>, vector<512x256xbf16>, vector<16x256xf32> -> vector<16x256xf32>
    %37 = vector.broadcast %16 : vector<1x256xf32> to vector<16x256xf32>
    %38 = arith.addf %36, %37 : vector<16x256xf32>
    %cst_22 = arith.constant 0.000000e+00 : f32
    %39 = vector.broadcast %cst_22 : f32 to vector<16x256xf32>
    %40 = arith.maximumf %38, %39 : vector<16x256xf32>
    %41 = vector.broadcast %17 : vector<1x256xf32> to vector<16x256xf32>
    %42 = arith.mulf %40, %41 : vector<16x256xf32>
    %cst_23 = arith.constant dense<0.000000e+00> : vector<16xf32>
    %43 = vector.multi_reduction <add>, %42, %cst_23 [1] : vector<16x256xf32> to vector<16xf32>
    %44 = vector.shape_cast %43 : vector<16xf32> to vector<16x1xf32>
    %45 = arith.maximumf %26, %35 : vector<16x1xf32>
    %46 = arith.maximumf %45, %44 : vector<16x1xf32>
    %47 = arith.subf %26, %46 : vector<16x1xf32>
    %48 = math.exp %47 : vector<16x1xf32>
    %49 = arith.subf %35, %46 : vector<16x1xf32>
    %50 = math.exp %49 : vector<16x1xf32>
    %51 = arith.subf %44, %46 : vector<16x1xf32>
    %52 = math.exp %51 : vector<16x1xf32>
    %53 = arith.addf %48, %50 : vector<16x1xf32>
    %54 = arith.addf %53, %52 : vector<16x1xf32>
    %55 = tpu.reciprocal %54 {approx = true} : vector<16x1xf32> -> vector<16x1xf32>
    %56 = vector.broadcast %48 : vector<16x1xf32> to vector<16x512xf32>
    %57 = arith.mulf %56, %5 : vector<16x512xf32>
    %58 = vector.broadcast %50 : vector<16x1xf32> to vector<16x512xf32>
    %59 = arith.mulf %58, %9 : vector<16x512xf32>
    %60 = arith.addf %57, %59 : vector<16x512xf32>
    %61 = vector.broadcast %52 : vector<16x1xf32> to vector<16x512xf32>
    %62 = arith.mulf %61, %11 : vector<16x512xf32>
    %63 = arith.addf %60, %62 : vector<16x512xf32>
    %64 = vector.broadcast %55 : vector<16x1xf32> to vector<16x512xf32>
    %65 = arith.mulf %63, %64 : vector<16x512xf32>
    %66 = arith.truncf %65 : vector<16x512xf32> to vector<16x512xbf16>
    %c0_24 = arith.constant 0 : index
    %c0_25 = arith.constant 0 : index
    %67 = vector.load %arg8[%c0_24, %c0_25] : memref<512x256xbf16, #tpu.memory_space<vmem>>, vector<512x256xbf16>
    %cst_26 = arith.constant dense<0.000000e+00> : vector<16x256xf32>
    %68 = tpu.matmul %66, %67, %cst_26 {dimension_numbers = #tpu.dot_dimension_numbers<[1], [0], [0], [1], [0, 0, 1, 1], [], []>} : vector<16x512xbf16>, vector<512x256xbf16>, vector<16x256xf32> -> vector<16x256xf32>
    %c0_27 = arith.constant 0 : index
    %c0_28 = arith.constant 0 : index
    %69 = vector.load %arg9[%c0_27, %c0_28] : memref<1x256xf32, #tpu.memory_space<vmem>>, vector<1x256xf32>
    %70 = vector.broadcast %69 : vector<1x256xf32> to vector<16x256xf32>
    %71 = arith.addf %68, %70 : vector<16x256xf32>
    %cst_29 = arith.constant 0.000000e+00 : f32
    %72 = vector.broadcast %cst_29 : f32 to vector<16x256xf32>
    %73 = arith.maximumf %71, %72 : vector<16x256xf32>
    %c0_30 = arith.constant 0 : index
    %c0_31 = arith.constant 0 : index
    %74 = vector.load %arg10[%c0_30, %c0_31] : memref<512x256xbf16, #tpu.memory_space<vmem>>, vector<512x256xbf16>
    %cst_32 = arith.constant dense<0.000000e+00> : vector<16x256xf32>
    %75 = tpu.matmul %13, %74, %cst_32 {dimension_numbers = #tpu.dot_dimension_numbers<[1], [0], [0], [1], [0, 0, 1, 1], [], []>} : vector<16x512xbf16>, vector<512x256xbf16>, vector<16x256xf32> -> vector<16x256xf32>
    %c0_33 = arith.constant 0 : index
    %c0_34 = arith.constant 0 : index
    %76 = vector.load %arg11[%c0_33, %c0_34] : memref<1x256xf32, #tpu.memory_space<vmem>>, vector<1x256xf32>
    %77 = vector.broadcast %76 : vector<1x256xf32> to vector<16x256xf32>
    %78 = arith.addf %75, %77 : vector<16x256xf32>
    %cst_35 = arith.constant 0.000000e+00 : f32
    %79 = vector.broadcast %cst_35 : f32 to vector<16x256xf32>
    %80 = arith.maximumf %78, %79 : vector<16x256xf32>
    %81 = arith.truncf %73 : vector<16x256xf32> to vector<16x256xbf16>
    %c0_36 = arith.constant 0 : index
    %c0_37 = arith.constant 0 : index
    %82 = vector.load %arg12[%c0_36, %c0_37] : memref<256x128xbf16, #tpu.memory_space<vmem>>, vector<256x128xbf16>
    %cst_38 = arith.constant dense<0.000000e+00> : vector<16x128xf32>
    %83 = tpu.matmul %81, %82, %cst_38 {dimension_numbers = #tpu.dot_dimension_numbers<[1], [0], [0], [1], [0, 0, 1, 1], [], []>} : vector<16x256xbf16>, vector<256x128xbf16>, vector<16x128xf32> -> vector<16x128xf32>
    %84 = arith.truncf %80 : vector<16x256xf32> to vector<16x256xbf16>
    %c0_39 = arith.constant 0 : index
    %c0_40 = arith.constant 0 : index
    %85 = vector.load %arg13[%c0_39, %c0_40] : memref<256x128xbf16, #tpu.memory_space<vmem>>, vector<256x128xbf16>
    %cst_41 = arith.constant dense<0.000000e+00> : vector<16x128xf32>
    %86 = tpu.matmul %84, %85, %cst_41 {dimension_numbers = #tpu.dot_dimension_numbers<[1], [0], [0], [1], [0, 0, 1, 1], [], []>} : vector<16x256xbf16>, vector<256x128xbf16>, vector<16x128xf32> -> vector<16x128xf32>
    %87 = arith.addf %83, %86 : vector<16x128xf32>
    %c0_42 = arith.constant 0 : index
    %c0_43 = arith.constant 0 : index
    %88 = vector.load %arg14[%c0_42, %c0_43] : memref<1x128xf32, #tpu.memory_space<vmem>>, vector<1x128xf32>
    %89 = vector.broadcast %88 : vector<1x128xf32> to vector<16x128xf32>
    %90 = arith.addf %87, %89 : vector<16x128xf32>
    %91 = arith.truncf %90 : vector<16x128xf32> to vector<16x128xbf16>
    %c0_44 = arith.constant 0 : index
    %c0_45 = arith.constant 0 : index
    %92 = vector.load %arg15[%c0_44, %c0_45] : memref<16x128xbf16, #tpu.memory_space<vmem>>, vector<16x128xbf16>
    tpu.vector_store %arg15[%c0_44, %c0_45], %91 {strides = array<i32>} : memref<16x128xbf16, #tpu.memory_space<vmem>>, vector<16x128xbf16>,
    return
  }
  func.func @transform_0(%arg0: i32) -> (i32, i32) {
    %c0_i32 = arith.constant 0 : i32
    %c0_i32_0 = arith.constant 0 : i32
    return %arg0, %c0_i32 : i32, i32
  }
  func.func @transform_1(%arg0: i32) -> (i32, i32) {
    %c0_i32 = arith.constant 0 : i32
    %c0_i32_0 = arith.constant 0 : i32
    return %arg0, %c0_i32 : i32, i32
  }
  func.func @transform_2(%arg0: i32) -> (i32, i32) {
    %c0_i32 = arith.constant 0 : i32
    %c0_i32_0 = arith.constant 0 : i32
    return %arg0, %c0_i32 : i32, i32
  }
  func.func @transform_3(%arg0: i32) -> (i32, i32) {
    %c0_i32 = arith.constant 0 : i32
    %c0_i32_0 = arith.constant 0 : i32
    return %arg0, %c0_i32 : i32, i32
  }
  func.func @transform_4(%arg0: i32) -> (i32, i32) {
    %c0_i32 = arith.constant 0 : i32
    %c0_i32_0 = arith.constant 0 : i32
    %c0_i32_1 = arith.constant 0 : i32
    return %c0_i32, %c0_i32_0 : i32, i32
  }
  func.func @transform_5(%arg0: i32) -> (i32, i32) {
    %c0_i32 = arith.constant 0 : i32
    %c0_i32_0 = arith.constant 0 : i32
    %c0_i32_1 = arith.constant 0 : i32
    return %c0_i32, %c0_i32_0 : i32, i32
  }
  func.func @transform_6(%arg0: i32) -> (i32, i32) {
    %c0_i32 = arith.constant 0 : i32
    %c0_i32_0 = arith.constant 0 : i32
    %c0_i32_1 = arith.constant 0 : i32
    return %c0_i32, %c0_i32_0 : i32, i32
  }
  func.func @transform_7(%arg0: i32) -> (i32, i32) {
    %c0_i32 = arith.constant 0 : i32
    %c0_i32_0 = arith.constant 0 : i32
    %c0_i32_1 = arith.constant 0 : i32
    return %c0_i32, %c0_i32_0 : i32, i32
  }
  func.func @transform_8(%arg0: i32) -> (i32, i32) {
    %c0_i32 = arith.constant 0 : i32
    %c0_i32_0 = arith.constant 0 : i32
    %c0_i32_1 = arith.constant 0 : i32
    return %c0_i32, %c0_i32_0 : i32, i32
  }
  func.func @transform_9(%arg0: i32) -> (i32, i32) {
    %c0_i32 = arith.constant 0 : i32
    %c0_i32_0 = arith.constant 0 : i32
    %c0_i32_1 = arith.constant 0 : i32
    return %c0_i32, %c0_i32_0 : i32, i32
  }
  func.func @transform_10(%arg0: i32) -> (i32, i32) {
    %c0_i32 = arith.constant 0 : i32
    %c0_i32_0 = arith.constant 0 : i32
    %c0_i32_1 = arith.constant 0 : i32
    return %c0_i32, %c0_i32_0 : i32, i32
  }
  func.func @transform_11(%arg0: i32) -> (i32, i32) {
    %c0_i32 = arith.constant 0 : i32
    %c0_i32_0 = arith.constant 0 : i32
    %c0_i32_1 = arith.constant 0 : i32
    return %c0_i32, %c0_i32_0 : i32, i32
  }
  func.func @transform_12(%arg0: i32) -> (i32, i32) {
    %c0_i32 = arith.constant 0 : i32
    %c0_i32_0 = arith.constant 0 : i32
    %c0_i32_1 = arith.constant 0 : i32
    return %c0_i32, %c0_i32_0 : i32, i32
  }
  func.func @transform_13(%arg0: i32) -> (i32, i32) {
    %c0_i32 = arith.constant 0 : i32
    %c0_i32_0 = arith.constant 0 : i32
    %c0_i32_1 = arith.constant 0 : i32
    return %c0_i32, %c0_i32_0 : i32, i32
  }
  func.func @transform_14(%arg0: i32) -> (i32, i32) {
    %c0_i32 = arith.constant 0 : i32
    %c0_i32_0 = arith.constant 0 : i32
    return %arg0, %c0_i32 : i32, i32
  }
}

</mosaic_0001>

<llo_original>
// kernel: tpu_custom_call.1
$region0: #{tpu_custom_call.1}
  #allocation0 [shape = 'u32[]', space=smem, size = 0x4, offset = 0x4, fixed_abs, tag = 'smem constant byte address 0x4 - core index']
  #allocation1 [shape = 'u32[72,128]{1,0:T(1,128)}', space=vmem, size = 0x9000, scoped, tag = 'internal scratch']
  %s0 = inlined_call_operand.hbm [shape: bf16[16,512], index: 0, kind: input, shape index: {}]
  %s1 = inlined_call_operand.hbm [shape: bf16[16,512], index: 1, kind: input, shape index: {}]
  %s2 = inlined_call_operand.hbm [shape: bf16[16,512], index: 2, kind: input, shape index: {}]
  %s3 = inlined_call_operand.vmem [shape: f32[16,2], index: 3, kind: input, shape index: {}]
  %s4 = inlined_call_operand.hbm [shape: bf16[512,256], index: 4, kind: input, shape index: {}]
  %s5 = inlined_call_operand.vmem [shape: f32[1,256], index: 5, kind: input, shape index: {}]
  %s6 = inlined_call_operand.vmem [shape: f32[1,256], index: 6, kind: input, shape index: {}]
  %s7 = inlined_call_operand.hbm [shape: bf16[512,256], index: 7, kind: input, shape index: {}]
  %s8 = inlined_call_operand.vmem [shape: f32[1,256], index: 8, kind: input, shape index: {}]
  %s9 = inlined_call_operand.hbm [shape: bf16[512,256], index: 9, kind: input, shape index: {}]
  %s10 = inlined_call_operand.vmem [shape: f32[1,256], index: 10, kind: input, shape index: {}]
  %s11 = inlined_call_operand.hbm [shape: bf16[256,128], index: 11, kind: input, shape index: {}]
  %s12 = inlined_call_operand.hbm [shape: bf16[256,128], index: 12, kind: input, shape index: {}]
  %s13 = inlined_call_operand.vmem [shape: f32[1,128], index: 13, kind: input, shape index: {}]
  %s14 = inlined_call_operand.hbm [shape: bf16[16,128], index: 14, kind: output, shape index: {}]
  %s15 = sld [smem:[#allocation0]]
  $region98: #{tpu_custom_call.1} parent=0
    _
  %s17 = ssub.s32 1, %s15
  %s18 = scalar_select 0, %s17, %s15
  $region1: #{tpu_custom_call.1} parent=0
    #allocation2 [shape = 'u8[16384]{0}', space=vmem, size = 0x4000, scoped, tag = 'input window, operand 0, single buffered']
    #allocation3 [shape = 's32[1]{0}', space=sflag, size = 0x4, scoped, tag = 'scoped memory for tpu_custom_call.1']
    #allocation4 [shape = 's32[1]{0}', space=sflag, size = 0x4, scoped, tag = 'scoped memory for tpu_custom_call.1']
    #allocation5 [shape = 'u8[16384]{0}', space=vmem, size = 0x4000, scoped, tag = 'input window, operand 1, single buffered']
    #allocation6 [shape = 's32[1]{0}', space=sflag, size = 0x4, scoped, tag = 'scoped memory for tpu_custom_call.1']
    #allocation7 [shape = 'u8[16384]{0}', space=vmem, size = 0x4000, scoped, tag = 'input window, operand 2, single buffered']
    #allocation8 [shape = 'u8[262144]{0}', space=vmem, size = 0x40000, scoped, tag = 'input window, operand 4, single buffered']
    #allocation9 [shape = 's32[1]{0}', space=sflag, size = 0x4, scoped, tag = 'scoped memory for tpu_custom_call.1']
    #allocation10 [shape = 'u8[262144]{0}', space=vmem, size = 0x40000, scoped, tag = 'input window, operand 7, single buffered']
    #allocation11 [shape = 'u8[262144]{0}', space=vmem, size = 0x40000, scoped, tag = 'input window, operand 9, single buffered']
    #allocation12 [shape = 's32[1]{0}', space=sflag, size = 0x4, scoped, tag = 'scoped memory for tpu_custom_call.1']
    #allocation13 [shape = 'u8[65536]{0}', space=vmem, size = 0x10000, scoped, tag = 'input window, operand 11, single buffered']
    #allocation14 [shape = 'u8[65536]{0}', space=vmem, size = 0x10000, scoped, tag = 'input window, operand 12, single buffered']
    #allocation15 [shape = 's32[1]{0}', space=sflag, size = 0x4, scoped, tag = 'scoped memory for tpu_custom_call.1']
    #allocation16 [shape = 'u8[4096]{0}', space=vmem, size = 0x1000, scoped, tag = 'output window, operand 0, single buffered']
    %19 = vsyncpa [#allocation3], 0
    %20 = vsyncpa [#allocation6], 0
    %21 = vsyncpa [#allocation9], 0
    %22 = vsyncpa [#allocation12], 0
    %23 = vsyncpa [#allocation15], 0
    %24 = vsyncpa [#allocation4], 0
    // Predicated region
    $region2: #{tpu_custom_call.1} parent=1 // pred_check
      _
    $region3: #{tpu_custom_call.1} parent=1 // pred_check_branch
      %26 = sbr.rel (0) target = $region5
    $region4: #{tpu_custom_call.1} parent=1 // pred_region
      %28 = vsyncadd [#allocation3], 0
      %s29 = sshll.u32 %s0, 4
      %s30 = int_to_ptr.hbm [resolvable:$true] %s29
      %s31 = sshll.u32 [#allocation2], 4
      %s32 = int_to_ptr.vmem [resolvable:$true] %s31
      %37 = dma.hbm_to_vmem [thread:$0]  %s30, 512, %s32, [#allocation3], 256, 256, 16
    $region5: #{tpu_custom_call.1} parent=1 // pred_fallthru
      _
    // Predicated region
    $region6: #{tpu_custom_call.1} parent=1 // pred_check
      _
    $region7: #{tpu_custom_call.1} parent=1 // pred_check_branch
      %39 = sbr.rel (0) target = $region9
    $region8: #{tpu_custom_call.1} parent=1 // pred_region
      %41 = vsyncadd [#allocation6], 0
      %s42 = sshll.u32 %s1, 4
      %s43 = int_to_ptr.hbm [resolvable:$true] %s42
      %s44 = sshll.u32 [#allocation5], 4
      %s45 = int_to_ptr.vmem [resolvable:$true] %s44
      %50 = dma.hbm_to_vmem [thread:$0]  %s43, 512, %s45, [#allocation6], 256, 256, 16
    $region9: #{tpu_custom_call.1} parent=1 // pred_fallthru
      _
    // Predicated region
    $region10: #{tpu_custom_call.1} parent=1 // pred_check
      _
    $region11: #{tpu_custom_call.1} parent=1 // pred_check_branch
      %52 = sbr.rel (0) target = $region13
    $region12: #{tpu_custom_call.1} parent=1 // pred_region
      %54 = vsyncadd [#allocation6], 0
      %s55 = sshll.u32 %s2, 4
      %s56 = int_to_ptr.hbm [resolvable:$true] %s55
      %s57 = sshll.u32 [#allocation7], 4
      %s58 = int_to_ptr.vmem [resolvable:$true] %s57
      %63 = dma.hbm_to_vmem [thread:$0]  %s56, 512, %s58, [#allocation6], 256, 256, 16
    $region13: #{tpu_custom_call.1} parent=1 // pred_fallthru
      _
    // Predicated region
    $region14: #{tpu_custom_call.1} parent=1 // pred_check
      _
    $region15: #{tpu_custom_call.1} parent=1 // pred_check_branch
      %65 = sbr.rel (0) target = $region17
    $region16: #{tpu_custom_call.1} parent=1 // pred_region
      _
    $region17: #{tpu_custom_call.1} parent=1 // pred_fallthru
      _
    // Predicated region
    $region18: #{tpu_custom_call.1} parent=1 // pred_check
      _
    $region19: #{tpu_custom_call.1} parent=1 // pred_check_branch
      %67 = sbr.rel (0) target = $region21
    $region20: #{tpu_custom_call.1} parent=1 // pred_region
      %69 = vsyncadd [#allocation9], 0
      %s70 = sshll.u32 %s4, 4
      %s71 = int_to_ptr.hbm [resolvable:$true] %s70
      %s72 = sshll.u32 [#allocation8], 4
      %s73 = int_to_ptr.vmem [resolvable:$true] %s72
      %78 = dma.hbm_to_vmem [thread:$0]  %s71, 8192, %s73, [#allocation9], 128, 128, 8
    $region21: #{tpu_custom_call.1} parent=1 // pred_fallthru
      _
    // Predicated region
    $region22: #{tpu_custom_call.1} parent=1 // pred_check
      _
    $region23: #{tpu_custom_call.1} parent=1 // pred_check_branch
      %80 = sbr.rel (0) target = $region25
    $region24: #{tpu_custom_call.1} parent=1 // pred_region
      _
    $region25: #{tpu_custom_call.1} parent=1 // pred_fallthru
      _
    // Predicated region
    $region26: #{tpu_custom_call.1} parent=1 // pred_check
      _
    $region27: #{tpu_custom_call.1} parent=1 // pred_check_branch
      %82 = sbr.rel (0) target = $region29
    $region28: #{tpu_custom_call.1} parent=1 // pred_region
      _
    $region29: #{tpu_custom_call.1} parent=1 // pred_fallthru
      _
    // Predicated region
    $region30: #{tpu_custom_call.1} parent=1 // pred_check
      _
    $region31: #{tpu_custom_call.1} parent=1 // pred_check_branch
      %84 = sbr.rel (0) target = $region33
    $region32: #{tpu_custom_call.1} parent=1 // pred_region
      %86 = vsyncadd [#allocation9], 0
      %s87 = sshll.u32 %s7, 4
      %s88 = int_to_ptr.hbm [resolvable:$true] %s87
      %s89 = sshll.u32 [#allocation10], 4
      %s90 = int_to_ptr.vmem [resolvable:$true] %s89
      %95 = dma.hbm_to_vmem [thread:$0]  %s88, 8192, %s90, [#allocation9], 128, 128, 8
    $region33: #{tpu_custom_call.1} parent=1 // pred_fallthru
      _
    // Predicated region
    $region34: #{tpu_custom_call.1} parent=1 // pred_check
      _
    $region35: #{tpu_custom_call.1} parent=1 // pred_check_branch
      %97 = sbr.rel (0) target = $region37
    $region36: #{tpu_custom_call.1} parent=1 // pred_region
      _
    $region37: #{tpu_custom_call.1} parent=1 // pred_fallthru
      _
    // Predicated region
    $region38: #{tpu_custom_call.1} parent=1 // pred_check
      _
    $region39: #{tpu_custom_call.1} parent=1 // pred_check_branch
      %99 = sbr.rel (0) target = $region41
    $region40: #{tpu_custom_call.1} parent=1 // pred_region
      %101 = vsyncadd [#allocation12], 0
      %s102 = sshll.u32 %s9, 4
      %s103 = int_to_ptr.hbm [resolvable:$true] %s102
      %s104 = sshll.u32 [#allocation11], 4
      %s105 = int_to_ptr.vmem [resolvable:$true] %s104
      %110 = dma.hbm_to_vmem [thread:$0]  %s103, 8192, %s105, [#allocation12], 128, 128, 8
    $region41: #{tpu_custom_call.1} parent=1 // pred_fallthru
      _
    // Predicated region
    $region42: #{tpu_custom_call.1} parent=1 // pred_check
      _
    $region43: #{tpu_custom_call.1} parent=1 // pred_check_branch
      %112 = sbr.rel (0) target = $region45
    $region44: #{tpu_custom_call.1} parent=1 // pred_region
      _
    $region45: #{tpu_custom_call.1} parent=1 // pred_fallthru
      _
    // Predicated region
    $region46: #{tpu_custom_call.1} parent=1 // pred_check
      _
    $region47: #{tpu_custom_call.1} parent=1 // pred_check_branch
      %114 = sbr.rel (0) target = $region49
    $region48: #{tpu_custom_call.1} parent=1 // pred_region
      %116 = vsyncadd [#allocation12], 0
      %s117 = sshll.u32 %s11, 4
      %s118 = int_to_ptr.hbm [resolvable:$true] %s117
      %s119 = sshll.u32 [#allocation13], 4
      %s120 = int_to_ptr.vmem [resolvable:$true] %s119
      %125 = dma.hbm_to_vmem [thread:$0]  %s118, 2048, %s120, [#allocation12], 64, 64, 4
    $region49: #{tpu_custom_call.1} parent=1 // pred_fallthru
      _
    // Predicated region
    $region50: #{tpu_custom_call.1} parent=1 // pred_check
      _
    $region51: #{tpu_custom_call.1} parent=1 // pred_check_branch
      %127 = sbr.rel (0) target = $region53
    $region52: #{tpu_custom_call.1} parent=1 // pred_region
      %129 = vsyncadd [#allocation15], 0
      %s130 = sshll.u32 %s12, 4
      %s131 = int_to_ptr.hbm [resolvable:$true] %s130
      %s132 = sshll.u32 [#allocation14], 4
      %s133 = int_to_ptr.vmem [resolvable:$true] %s132
      %138 = dma.hbm_to_vmem [thread:$0]  %s131, 2048, %s133, [#allocation15], 64, 64, 4
    $region53: #{tpu_custom_call.1} parent=1 // pred_fallthru
      _
    // Predicated region
    $region54: #{tpu_custom_call.1} parent=1 // pred_check
      _
    $region55: #{tpu_custom_call.1} parent=1 // pred_check_branch
      %140 = sbr.rel (0) target = $region57
    $region56: #{tpu_custom_call.1} parent=1 // pred_region
      _
    $region57: #{tpu_custom_call.1} parent=1 // pred_fallthru
      _
    // Predicated region
    $region58: #{tpu_custom_call.1} parent=1 // pred_check
      _
    $region59: #{tpu_custom_call.1} parent=1 // pred_check_branch
      %142 = sbr.rel (0) target = $region61
    $region60: #{tpu_custom_call.1} parent=1 // pred_region
      %144 = dma.done [#allocation3], 512
    $region61: #{tpu_custom_call.1} parent=1 // pred_fallthru
      _
    // Predicated region
    $region62: #{tpu_custom_call.1} parent=1 // pred_check
      _
    $region63: #{tpu_custom_call.1} parent=1 // pred_check_branch
      %146 = sbr.rel (0) target = $region65
    $region64: #{tpu_custom_call.1} parent=1 // pred_region
      %148 = dma.done [#allocation6], 512
    $region65: #{tpu_custom_call.1} parent=1 // pred_fallthru
      _
    // Predicated region
    $region66: #{tpu_custom_call.1} parent=1 // pred_check
      _
    $region67: #{tpu_custom_call.1} parent=1 // pred_check_branch
      %150 = sbr.rel (0) target = $region69
    $region68: #{tpu_custom_call.1} parent=1 // pred_region
      %152 = dma.done [#allocation6], 512
    $region69: #{tpu_custom_call.1} parent=1 // pred_fallthru
      _
    // Predicated region
    $region70: #{tpu_custom_call.1} parent=1 // pred_check
      _
    $region71: #{tpu_custom_call.1} parent=1 // pred_check_branch
      %154 = sbr.rel (0) target = $region73
    $region72: #{tpu_custom_call.1} parent=1 // pred_region
      %156 = dma.done [#allocation9], 8192
    $region73: #{tpu_custom_call.1} parent=1 // pred_fallthru
      _
    // Predicated region
    $region74: #{tpu_custom_call.1} parent=1 // pred_check
      _
    $region75: #{tpu_custom_call.1} parent=1 // pred_check_branch
      %158 = sbr.rel (0) target = $region77
    $region76: #{tpu_custom_call.1} parent=1 // pred_region
      %160 = dma.done [#allocation9], 8192
    $region77: #{tpu_custom_call.1} parent=1 // pred_fallthru
      _
    // Predicated region
    $region78: #{tpu_custom_call.1} parent=1 // pred_check
      _
    $region79: #{tpu_custom_call.1} parent=1 // pred_check_branch
      %162 = sbr.rel (0) target = $region81
    $region80: #{tpu_custom_call.1} parent=1 // pred_region
      %164 = dma.done [#allocation12], 8192
    $region81: #{tpu_custom_call.1} parent=1 // pred_fallthru
      _
    // Predicated region
    $region82: #{tpu_custom_call.1} parent=1 // pred_check
      _
    $region83: #{tpu_custom_call.1} parent=1 // pred_check_branch
      %166 = sbr.rel (0) target = $region85
    $region84: #{tpu_custom_call.1} parent=1 // pred_region
      %168 = dma.done [#allocation12], 2048
    $region85: #{tpu_custom_call.1} parent=1 // pred_fallthru
      _
    // Predicated region
    $region86: #{tpu_custom_call.1} parent=1 // pred_check
      _
    $region87: #{tpu_custom_call.1} parent=1 // pred_check_branch
      %170 = sbr.rel (0) target = $region89
    $region88: #{tpu_custom_call.1} parent=1 // pred_region
      %172 = dma.done [#allocation15], 2048
    $region89: #{tpu_custom_call.1} parent=1 // pred_fallthru
      _
    %v173 = vld [vmem:[%s3] sm:$0xff]
    %v174 = vld [vmem:[%s3 + $0x8] sm:$0xff]
    %v175 = vld [vmem:[#allocation2] sm:$0xff]
    %v176 = vld [vmem:[#allocation2 + $0x8] sm:$0xff]
    %v177 = vld [vmem:[#allocation2 + $0x10] sm:$0xff]
    %v178 = vld [vmem:[#allocation2 + $0x18] sm:$0xff]
    %v179 = vunpack.c.l.bf16 %v175
    %v180 = vunpack.c.h.bf16 %v175
    %v181 = vunpack.c.l.bf16 %v176
    %v182 = vunpack.c.h.bf16 %v176
    %v183 = vunpack.c.l.bf16 %v177
    %v184 = vunpack.c.h.bf16 %v177
    %v185 = vunpack.c.l.bf16 %v178
    %v186 = vunpack.c.h.bf16 %v178
    %188 = vset.pattern.permute.xlu0 0
    %189 = vperm.xlu0 %188, %v173
    %v190 = vpop.permute.xlu0 %189
    %193 = vset.pattern.permute.xlu0 0
    %194 = vperm.xlu0 %193, %v174
    %v195 = vpop.permute.xlu0 %194
    %v197 = vmul.f32 %v179, %v190
    %v198 = vmul.f32 %v180, %v190
    %v199 = vmul.f32 %v181, %v190
    %v200 = vmul.f32 %v182, %v190
    %v201 = vmul.f32 %v183, %v195
    %v202 = vmul.f32 %v184, %v195
    %v203 = vmul.f32 %v185, %v195
    %v204 = vmul.f32 %v186, %v195
    %v205 = vld [vmem:[#allocation5] sm:$0xff]
    %v206 = vld [vmem:[#allocation5 + $0x8] sm:$0xff]
    %v207 = vld [vmem:[#allocation5 + $0x10] sm:$0xff]
    %v208 = vld [vmem:[#allocation5 + $0x18] sm:$0xff]
    %v209 = vunpack.c.l.bf16 %v205
    %v210 = vunpack.c.h.bf16 %v205
    %v211 = vunpack.c.l.bf16 %v206
    %v212 = vunpack.c.h.bf16 %v206
    %v213 = vunpack.c.l.bf16 %v207
    %v214 = vunpack.c.h.bf16 %v207
    %v215 = vunpack.c.l.bf16 %v208
    %v216 = vunpack.c.h.bf16 %v208
    %217 = vset.pattern.permute.xlu0 1
    %218 = vperm.xlu0 %217, %v173
    %v219 = vpop.permute.xlu0 %218
    %221 = vset.pattern.permute.xlu0 1
    %222 = vperm.xlu0 %221, %v174
    %v223 = vpop.permute.xlu0 %222
    %v225 = vmul.f32 %v209, %v219
    %v226 = vmul.f32 %v210, %v219
    %v227 = vmul.f32 %v211, %v219
    %v228 = vmul.f32 %v212, %v219
    %v229 = vmul.f32 %v213, %v223
    %v230 = vmul.f32 %v214, %v223
    %v231 = vmul.f32 %v215, %v223
    %v232 = vmul.f32 %v216, %v223
    %v233 = vld [vmem:[#allocation7] sm:$0xff]
    %v234 = vld [vmem:[#allocation7 + $0x8] sm:$0xff]
    %v235 = vld [vmem:[#allocation7 + $0x10] sm:$0xff]
    %v236 = vld [vmem:[#allocation7 + $0x18] sm:$0xff]
    %v237 = vunpack.c.l.bf16 %v233
    %v238 = vunpack.c.h.bf16 %v233
    %v239 = vunpack.c.l.bf16 %v234
    %v240 = vunpack.c.h.bf16 %v234
    %v241 = vunpack.c.l.bf16 %v235
    %v242 = vunpack.c.h.bf16 %v235
    %v243 = vunpack.c.l.bf16 %v236
    %v244 = vunpack.c.h.bf16 %v236
    %v245 = vpack.c.bf16 %v201, %v197
    %v246 = vpack.c.bf16 %v202, %v198
    %v247 = vpack.c.bf16 %v203, %v199
    %v248 = vpack.c.bf16 %v204, %v200
    %v249 = vpack.c.bf16 %v229, %v225
    %v250 = vpack.c.bf16 %v230, %v226
    %v251 = vpack.c.bf16 %v231, %v227
    %v252 = vpack.c.bf16 %v232, %v228
    %v253 = vld [vmem:[#allocation8] sm:$0xff]
    %v254 = vld [vmem:[#allocation8 + $0x8] sm:$0xff]
    %v255 = vld [vmem:[#allocation8 + $0x10] sm:$0xff]
    %v256 = vld [vmem:[#allocation8 + $0x18] sm:$0xff]
    %v257 = vld [vmem:[#allocation8 + $0x20] sm:$0xff]
    %v258 = vld [vmem:[#allocation8 + $0x28] sm:$0xff]
    %v259 = vld [vmem:[#allocation8 + $0x30] sm:$0xff]
    %v260 = vld [vmem:[#allocation8 + $0x38] sm:$0xff]
    %v261 = vld [vmem:[#allocation8 + $0x40] sm:$0xff]
    %v262 = vld [vmem:[#allocation8 + $0x48] sm:$0xff]
    %v263 = vld [vmem:[#allocation8 + $0x50] sm:$0xff]
    %v264 = vld [vmem:[#allocation8 + $0x58] sm:$0xff]
    %v265 = vld [vmem:[#allocation8 + $0x60] sm:$0xff]
    %v266 = vld [vmem:[#allocation8 + $0x68] sm:$0xff]
    %v267 = vld [vmem:[#allocation8 + $0x70] sm:$0xff]
    %v268 = vld [vmem:[#allocation8 + $0x78] sm:$0xff]
    %v269 = vld [vmem:[#allocation8 + $0x80] sm:$0xff]
    %v270 = vld [vmem:[#allocation8 + $0x88] sm:$0xff]
    %v271 = vld [vmem:[#allocation8 + $0x90] sm:$0xff]
    %v272 = vld [vmem:[#allocation8 + $0x98] sm:$0xff]
    %v273 = vld [vmem:[#allocation8 + $0xa0] sm:$0xff]
    %v274 = vld [vmem:[#allocation8 + $0xa8] sm:$0xff]
    %v275 = vld [vmem:[#allocation8 + $0xb0] sm:$0xff]
    %v276 = vld [vmem:[#allocation8 + $0xb8] sm:$0xff]
    %v277 = vld [vmem:[#allocation8 + $0xc0] sm:$0xff]
    %v278 = vld [vmem:[#allocation8 + $0xc8] sm:$0xff]
    %v279 = vld [vmem:[#allocation8 + $0xd0] sm:$0xff]
    %v280 = vld [vmem:[#allocation8 + $0xd8] sm:$0xff]
    %v281 = vld [vmem:[#allocation8 + $0xe0] sm:$0xff]
    %v282 = vld [vmem:[#allocation8 + $0xe8] sm:$0xff]
    %v283 = vld [vmem:[#allocation8 + $0xf0] sm:$0xff]
    %v284 = vld [vmem:[#allocation8 + $0xf8] sm:$0xff]
    %v285 = vld [vmem:[#allocation8 + $0x100] sm:$0xff]
    %v286 = vld [vmem:[#allocation8 + $0x108] sm:$0xff]
    %v287 = vld [vmem:[#allocation8 + $0x110] sm:$0xff]
    %v288 = vld [vmem:[#allocation8 + $0x118] sm:$0xff]
    %v289 = vld [vmem:[#allocation8 + $0x120] sm:$0xff]
    %v290 = vld [vmem:[#allocation8 + $0x128] sm:$0xff]
    %v291 = vld [vmem:[#allocation8 + $0x130] sm:$0xff]
    %v292 = vld [vmem:[#allocation8 + $0x138] sm:$0xff]
    %v293 = vld [vmem:[#allocation8 + $0x140] sm:$0xff]
    %v294 = vld [vmem:[#allocation8 + $0x148] sm:$0xff]
    %v295 = vld [vmem:[#allocation8 + $0x150] sm:$0xff]
    %v296 = vld [vmem:[#allocation8 + $0x158] sm:$0xff]
    %v297 = vld [vmem:[#allocation8 + $0x160] sm:$0xff]
    %v298 = vld [vmem:[#allocation8 + $0x168] sm:$0xff]
    %v299 = vld [vmem:[#allocation8 + $0x170] sm:$0xff]
    %v300 = vld [vmem:[#allocation8 + $0x178] sm:$0xff]
    %v301 = vld [vmem:[#allocation8 + $0x180] sm:$0xff]
    %v302 = vld [vmem:[#allocation8 + $0x188] sm:$0xff]
    %v303 = vld [vmem:[#allocation8 + $0x190] sm:$0xff]
    %v304 = vld [vmem:[#allocation8 + $0x198] sm:$0xff]
    %v305 = vld [vmem:[#allocation8 + $0x1a0] sm:$0xff]
    %v306 = vld [vmem:[#allocation8 + $0x1a8] sm:$0xff]
    %v307 = vld [vmem:[#allocation8 + $0x1b0] sm:$0xff]
    %v308 = vld [vmem:[#allocation8 + $0x1b8] sm:$0xff]
    %v309 = vld [vmem:[#allocation8 + $0x1c0] sm:$0xff]
    %v310 = vld [vmem:[#allocation8 + $0x1c8] sm:$0xff]
    %v311 = vld [vmem:[#allocation8 + $0x1d0] sm:$0xff]
    %v312 = vld [vmem:[#allocation8 + $0x1d8] sm:$0xff]
    %v313 = vld [vmem:[#allocation8 + $0x1e0] sm:$0xff]
    %v314 = vld [vmem:[#allocation8 + $0x1e8] sm:$0xff]
    %v315 = vld [vmem:[#allocation8 + $0x1f0] sm:$0xff]
    %v316 = vld [vmem:[#allocation8 + $0x1f8] sm:$0xff]
    %v317 = vld [vmem:[%s5] sm:$0x3]
    %v318 = vld [vmem:[%s6] sm:$0x3]
    %v320 = vperm.slane %v317, 0
    %v321 = vperm.slane %v317, 1
    %v388 = vunpack.c.l.b16 %v253
    %v389 = vunpack.c.h.b16 %v253
    %v390 = vunpack.c.l.b16 %v254
    %v391 = vunpack.c.h.b16 %v254
    %v392 = vunpack.c.l.b16 %v255
    %v393 = vunpack.c.h.b16 %v255
    %v394 = vunpack.c.l.b16 %v256
    %v395 = vunpack.c.h.b16 %v256
    %v396 = vunpack.c.l.b16 %v257
    %v397 = vunpack.c.h.b16 %v257
    %v398 = vunpack.c.l.b16 %v258
    %v399 = vunpack.c.h.b16 %v258
    %v400 = vunpack.c.l.b16 %v259
    %v401 = vunpack.c.h.b16 %v259
    %v402 = vunpack.c.l.b16 %v260
    %v403 = vunpack.c.h.b16 %v260
    %v404 = vunpack.c.l.b16 %v261
    %v405 = vunpack.c.h.b16 %v261
    %v406 = vunpack.c.l.b16 %v262
    %v407 = vunpack.c.h.b16 %v262
    %v408 = vunpack.c.l.b16 %v263
    %v409 = vunpack.c.h.b16 %v263
    %v410 = vunpack.c.l.b16 %v264
    %v411 = vunpack.c.h.b16 %v264
    %v412 = vunpack.c.l.b16 %v265
    %v413 = vunpack.c.h.b16 %v265
    %v414 = vunpack.c.l.b16 %v266
    %v415 = vunpack.c.h.b16 %v266
    %v416 = vunpack.c.l.b16 %v267
    %v417 = vunpack.c.h.b16 %v267
    %v418 = vunpack.c.l.b16 %v268
    %v419 = vunpack.c.h.b16 %v268
    %v420 = vunpack.c.l.b16 %v269
    %v421 = vunpack.c.h.b16 %v269
    %v422 = vunpack.c.l.b16 %v270
    %v423 = vunpack.c.h.b16 %v270
    %v424 = vunpack.c.l.b16 %v271
    %v425 = vunpack.c.h.b16 %v271
    %v426 = vunpack.c.l.b16 %v272
    %v427 = vunpack.c.h.b16 %v272
    %v428 = vunpack.c.l.b16 %v273
    %v429 = vunpack.c.h.b16 %v273
    %v430 = vunpack.c.l.b16 %v274
    %v431 = vunpack.c.h.b16 %v274
    %v432 = vunpack.c.l.b16 %v275
    %v433 = vunpack.c.h.b16 %v275
    %v434 = vunpack.c.l.b16 %v276
    %v435 = vunpack.c.h.b16 %v276
    %v436 = vunpack.c.l.b16 %v277
    %v437 = vunpack.c.h.b16 %v277
    %v438 = vunpack.c.l.b16 %v278
    %v439 = vunpack.c.h.b16 %v278
    %v440 = vunpack.c.l.b16 %v279
    %v441 = vunpack.c.h.b16 %v279
    %v442 = vunpack.c.l.b16 %v280
    %v443 = vunpack.c.h.b16 %v280
    %v444 = vunpack.c.l.b16 %v281
    %v445 = vunpack.c.h.b16 %v281
    %v446 = vunpack.c.l.b16 %v282
    %v447 = vunpack.c.h.b16 %v282
    %v448 = vunpack.c.l.b16 %v283
    %v449 = vunpack.c.h.b16 %v283
    %v450 = vunpack.c.l.b16 %v284
    %v451 = vunpack.c.h.b16 %v284
    %v452 = vunpack.c.l.b16 %v285
    %v453 = vunpack.c.h.b16 %v285
    %v454 = vunpack.c.l.b16 %v286
    %v455 = vunpack.c.h.b16 %v286
    %v456 = vunpack.c.l.b16 %v287
    %v457 = vunpack.c.h.b16 %v287
    %v458 = vunpack.c.l.b16 %v288
    %v459 = vunpack.c.h.b16 %v288
    %v460 = vunpack.c.l.b16 %v289
    %v461 = vunpack.c.h.b16 %v289
    %v462 = vunpack.c.l.b16 %v290
    %v463 = vunpack.c.h.b16 %v290
    %v464 = vunpack.c.l.b16 %v291
    %v465 = vunpack.c.h.b16 %v291
    %v466 = vunpack.c.l.b16 %v292
    %v467 = vunpack.c.h.b16 %v292
    %v468 = vunpack.c.l.b16 %v293
    %v469 = vunpack.c.h.b16 %v293
    %v470 = vunpack.c.l.b16 %v294
    %v471 = vunpack.c.h.b16 %v294
    %v472 = vunpack.c.l.b16 %v295
    %v473 = vunpack.c.h.b16 %v295
    %v474 = vunpack.c.l.b16 %v296
    %v475 = vunpack.c.h.b16 %v296
    %v476 = vunpack.c.l.b16 %v297
    %v477 = vunpack.c.h.b16 %v297
    %v478 = vunpack.c.l.b16 %v298
    %v479 = vunpack.c.h.b16 %v298
    %v480 = vunpack.c.l.b16 %v299
    %v481 = vunpack.c.h.b16 %v299
    %v482 = vunpack.c.l.b16 %v300
    %v483 = vunpack.c.h.b16 %v300
    %v484 = vunpack.c.l.b16 %v301
    %v485 = vunpack.c.h.b16 %v301
    %v486 = vunpack.c.l.b16 %v302
    %v487 = vunpack.c.h.b16 %v302
    %v488 = vunpack.c.l.b16 %v303
    %v489 = vunpack.c.h.b16 %v303
    %v490 = vunpack.c.l.b16 %v304
    %v491 = vunpack.c.h.b16 %v304
    %v492 = vunpack.c.l.b16 %v305
    %v493 = vunpack.c.h.b16 %v305
    %v494 = vunpack.c.l.b16 %v306
    %v495 = vunpack.c.h.b16 %v306
    %v496 = vunpack.c.l.b16 %v307
    %v497 = vunpack.c.h.b16 %v307
    %v498 = vunpack.c.l.b16 %v308
    %v499 = vunpack.c.h.b16 %v308
    %v500 = vunpack.c.l.b16 %v309
    %v501 = vunpack.c.h.b16 %v309
    %v502 = vunpack.c.l.b16 %v310
    %v503 = vunpack.c.h.b16 %v310
    %v504 = vunpack.c.l.b16 %v311
    %v505 = vunpack.c.h.b16 %v311
    %v506 = vunpack.c.l.b16 %v312
    %v507 = vunpack.c.h.b16 %v312
    %v508 = vunpack.c.l.b16 %v313
    %v509 = vunpack.c.h.b16 %v313
    %v510 = vunpack.c.l.b16 %v314
    %v511 = vunpack.c.h.b16 %v314
    %v512 = vunpack.c.l.b16 %v315
    %v513 = vunpack.c.h.b16 %v315
    %v514 = vunpack.c.l.b16 %v316
    %v515 = vunpack.c.h.b16 %v316
    %v516 = vpack.c.b16 %v390, %v388
    %v517 = vpack.c.b16 %v391, %v389
    %v518 = vpack.c.b16 %v394, %v392
    %v519 = vpack.c.b16 %v395, %v393
    %v520 = vpack.c.b16 %v398, %v396
    %v521 = vpack.c.b16 %v399, %v397
    %v522 = vpack.c.b16 %v402, %v400
    %v523 = vpack.c.b16 %v403, %v401
    %v524 = vpack.c.b16 %v406, %v404
    %v525 = vpack.c.b16 %v407, %v405
    %v526 = vpack.c.b16 %v410, %v408
    %v527 = vpack.c.b16 %v411, %v409
    %v528 = vpack.c.b16 %v414, %v412
    %v529 = vpack.c.b16 %v415, %v413
    %v530 = vpack.c.b16 %v418, %v416
    %v531 = vpack.c.b16 %v419, %v417
    %v532 = vpack.c.b16 %v422, %v420
    %v533 = vpack.c.b16 %v423, %v421
    %v534 = vpack.c.b16 %v426, %v424
    %v535 = vpack.c.b16 %v427, %v425
    %v536 = vpack.c.b16 %v430, %v428
    %v537 = vpack.c.b16 %v431, %v429
    %v538 = vpack.c.b16 %v434, %v432
    %v539 = vpack.c.b16 %v435, %v433
    %v540 = vpack.c.b16 %v438, %v436
    %v541 = vpack.c.b16 %v439, %v437
    %v542 = vpack.c.b16 %v442, %v440
    %v543 = vpack.c.b16 %v443, %v441
    %v544 = vpack.c.b16 %v446, %v444
    %v545 = vpack.c.b16 %v447, %v445
    %v546 = vpack.c.b16 %v450, %v448
    %v547 = vpack.c.b16 %v451, %v449
    %v548 = vpack.c.b16 %v454, %v452
    %v549 = vpack.c.b16 %v455, %v453
    %v550 = vpack.c.b16 %v458, %v456
    %v551 = vpack.c.b16 %v459, %v457
    %v552 = vpack.c.b16 %v462, %v460
    %v553 = vpack.c.b16 %v463, %v461
    %v554 = vpack.c.b16 %v466, %v464
    %v555 = vpack.c.b16 %v467, %v465
    %v556 = vpack.c.b16 %v470, %v468
    %v557 = vpack.c.b16 %v471, %v469
    %v558 = vpack.c.b16 %v474, %v472
    %v559 = vpack.c.b16 %v475, %v473
    %v560 = vpack.c.b16 %v478, %v476
    %v561 = vpack.c.b16 %v479, %v477
    %v562 = vpack.c.b16 %v482, %v480
    %v563 = vpack.c.b16 %v483, %v481
    %v564 = vpack.c.b16 %v486, %v484
    %v565 = vpack.c.b16 %v487, %v485
    %v566 = vpack.c.b16 %v490, %v488
    %v567 = vpack.c.b16 %v491, %v489
    %v568 = vpack.c.b16 %v494, %v492
    %v569 = vpack.c.b16 %v495, %v493
    %v570 = vpack.c.b16 %v498, %v496
    %v571 = vpack.c.b16 %v499, %v497
    %v572 = vpack.c.b16 %v502, %v500
    %v573 = vpack.c.b16 %v503, %v501
    %v574 = vpack.c.b16 %v506, %v504
    %v575 = vpack.c.b16 %v507, %v505
    %v576 = vpack.c.b16 %v510, %v508
    %v577 = vpack.c.b16 %v511, %v509
    %v578 = vpack.c.b16 %v514, %v512
    %v579 = vpack.c.b16 %v515, %v513
    %644 = vmatpush.bf16.msra.mxu0 %v530
    %645 = vmatpush.bf16.msra.mxu0 %v528
    %646 = vmatpush.bf16.msra.mxu0 %v526
    %647 = vmatpush.bf16.msra.mxu0 %v524
    %648 = vmatpush.bf16.msra.mxu0 %v522
    %649 = vmatpush.bf16.msra.mxu0 %v520
    %650 = vmatpush.bf16.msra.mxu0 %v518
    %651 = vmatpush.bf16.msra.mxu0 %v516
    %652 = vmatmul.bf16.gmra.mxu0 %v245
    %v653 = vpop.f32.mrf.mxu0
    %v654 = vadd.f32 %v320, %v653
    %v655 = vpop.f32.mrf.mxu0
    %v656 = vadd.f32 %v320, %v655
    %657 = vdwg.mxu0
    %658 = vmatpush.bf16.msra.mxu0 %v546
    %659 = vmatpush.bf16.msra.mxu0 %v544
    %660 = vmatpush.bf16.msra.mxu0 %v542
    %661 = vmatpush.bf16.msra.mxu0 %v540
    %662 = vmatpush.bf16.msra.mxu0 %v538
    %663 = vmatpush.bf16.msra.mxu0 %v536
    %664 = vmatpush.bf16.msra.mxu0 %v534
    %665 = vmatpush.bf16.msra.mxu0 %v532
    %666 = vmatmul.bf16.gmra.mxu0 %v246
    %v667 = vpop.f32.mrf.mxu0
    %v668 = vadd.f32 %v654, %v667
    %v669 = vpop.f32.mrf.mxu0
    %v670 = vadd.f32 %v656, %v669
    %671 = vdwg.mxu0
    %672 = vmatpush.bf16.msra.mxu0 %v562
    %673 = vmatpush.bf16.msra.mxu0 %v560
    %674 = vmatpush.bf16.msra.mxu0 %v558
    %675 = vmatpush.bf16.msra.mxu0 %v556
    %676 = vmatpush.bf16.msra.mxu0 %v554
    %677 = vmatpush.bf16.msra.mxu0 %v552
    %678 = vmatpush.bf16.msra.mxu0 %v550
    %679 = vmatpush.bf16.msra.mxu0 %v548
    %680 = vmatmul.bf16.gmra.mxu0 %v247
    %v681 = vpop.f32.mrf.mxu0
    %v682 = vadd.f32 %v668, %v681
    %v683 = vpop.f32.mrf.mxu0
    %v684 = vadd.f32 %v670, %v683
    %685 = vdwg.mxu0
    %686 = vmatpush.bf16.msra.mxu0 %v578
    %687 = vmatpush.bf16.msra.mxu0 %v576
    %688 = vmatpush.bf16.msra.mxu0 %v574
    %689 = vmatpush.bf16.msra.mxu0 %v572
    %690 = vmatpush.bf16.msra.mxu0 %v570
    %691 = vmatpush.bf16.msra.mxu0 %v568
    %692 = vmatpush.bf16.msra.mxu0 %v566
    %693 = vmatpush.bf16.msra.mxu0 %v564
    %694 = vmatmul.bf16.gmra.mxu0 %v248
    %v695 = vpop.f32.mrf.mxu0
    %v696 = vadd.f32 %v682, %v695
    %v697 = vpop.f32.mrf.mxu0
    %v698 = vadd.f32 %v684, %v697
    %699 = vdwg.mxu0
    %700 = vmatpush.bf16.msra.mxu0 %v531
    %701 = vmatpush.bf16.msra.mxu0 %v529
    %702 = vmatpush.bf16.msra.mxu0 %v527
    %703 = vmatpush.bf16.msra.mxu0 %v525
    %704 = vmatpush.bf16.msra.mxu0 %v523
    %705 = vmatpush.bf16.msra.mxu0 %v521
    %706 = vmatpush.bf16.msra.mxu0 %v519
    %707 = vmatpush.bf16.msra.mxu0 %v517
    %708 = vmatmul.bf16.gmra.mxu0 %v245
    %v709 = vpop.f32.mrf.mxu0
    %v710 = vadd.f32 %v321, %v709
    %v711 = vpop.f32.mrf.mxu0
    %v712 = vadd.f32 %v321, %v711
    %713 = vdwg.mxu0
    %714 = vmatpush.bf16.msra.mxu0 %v547
    %715 = vmatpush.bf16.msra.mxu0 %v545
    %716 = vmatpush.bf16.msra.mxu0 %v543
    %717 = vmatpush.bf16.msra.mxu0 %v541
    %718 = vmatpush.bf16.msra.mxu0 %v539
    %719 = vmatpush.bf16.msra.mxu0 %v537
    %720 = vmatpush.bf16.msra.mxu0 %v535
    %721 = vmatpush.bf16.msra.mxu0 %v533
    %722 = vmatmul.bf16.gmra.mxu0 %v246
    %v723 = vpop.f32.mrf.mxu0
    %v724 = vadd.f32 %v710, %v723
    %v725 = vpop.f32.mrf.mxu0
    %v726 = vadd.f32 %v712, %v725
    %727 = vdwg.mxu0
    %728 = vmatpush.bf16.msra.mxu0 %v563
    %729 = vmatpush.bf16.msra.mxu0 %v561
    %730 = vmatpush.bf16.msra.mxu0 %v559
    %731 = vmatpush.bf16.msra.mxu0 %v557
    %732 = vmatpush.bf16.msra.mxu0 %v555
    %733 = vmatpush.bf16.msra.mxu0 %v553
    %734 = vmatpush.bf16.msra.mxu0 %v551
    %735 = vmatpush.bf16.msra.mxu0 %v549
    %736 = vmatmul.bf16.gmra.mxu0 %v247
    %v737 = vpop.f32.mrf.mxu0
    %v738 = vadd.f32 %v724, %v737
    %v739 = vpop.f32.mrf.mxu0
    %v740 = vadd.f32 %v726, %v739
    %741 = vdwg.mxu0
    %742 = vmatpush.bf16.msra.mxu0 %v579
    %743 = vmatpush.bf16.msra.mxu0 %v577
    %744 = vmatpush.bf16.msra.mxu0 %v575
    %745 = vmatpush.bf16.msra.mxu0 %v573
    %746 = vmatpush.bf16.msra.mxu0 %v571
    %747 = vmatpush.bf16.msra.mxu0 %v569
    %748 = vmatpush.bf16.msra.mxu0 %v567
    %749 = vmatpush.bf16.msra.mxu0 %v565
    %750 = vmatmul.bf16.gmra.mxu0 %v248
    %v751 = vpop.f32.mrf.mxu0
    %v752 = vadd.f32 %v738, %v751
    %v753 = vpop.f32.mrf.mxu0
    %v754 = vadd.f32 %v740, %v753
    %755 = vdwg.mxu0
    %v756 = vmax.f32 %v696, 0.0
    %v757 = vmax.f32 %v752, 0.0
    %v758 = vmax.f32 %v698, 0.0
    %v759 = vmax.f32 %v754, 0.0
    %v761 = vperm.slane %v318, 0
    %v762 = vperm.slane %v318, 1
    %v765 = vmul.f32 %v756, %v761
    %v766 = vmul.f32 %v757, %v762
    %v767 = vmul.f32 %v758, %v761
    %v768 = vmul.f32 %v759, %v762
    %v769 = vadd.f32 %v765, %v766
    %770 = vadd.xlane.f32.xlu0 %v769
    %v771 = vpop.xlane.xlu0 %770
    %v772 = vadd.f32 %v767, %v768
    %773 = vadd.xlane.f32.xlu0 %v772
    %v774 = vpop.xlane.xlu0 %773
    %775 = vmatpush.bf16.msra.mxu0 %v530
    %776 = vmatpush.bf16.msra.mxu0 %v528
    %777 = vmatpush.bf16.msra.mxu0 %v526
    %778 = vmatpush.bf16.msra.mxu0 %v524
    %779 = vmatpush.bf16.msra.mxu0 %v522
    %780 = vmatpush.bf16.msra.mxu0 %v520
    %781 = vmatpush.bf16.msra.mxu0 %v518
    %782 = vmatpush.bf16.msra.mxu0 %v516
    %783 = vmatmul.bf16.gmra.mxu0 %v249
    %v784 = vpop.f32.mrf.mxu0
    %v785 = vadd.f32 %v320, %v784
    %v786 = vpop.f32.mrf.mxu0
    %v787 = vadd.f32 %v320, %v786
    %788 = vdwg.mxu0
    %789 = vmatpush.bf16.msra.mxu0 %v546
    %790 = vmatpush.bf16.msra.mxu0 %v544
    %791 = vmatpush.bf16.msra.mxu0 %v542
    %792 = vmatpush.bf16.msra.mxu0 %v540
    %793 = vmatpush.bf16.msra.mxu0 %v538
    %794 = vmatpush.bf16.msra.mxu0 %v536
    %795 = vmatpush.bf16.msra.mxu0 %v534
    %796 = vmatpush.bf16.msra.mxu0 %v532
    %797 = vmatmul.bf16.gmra.mxu0 %v250
    %v798 = vpop.f32.mrf.mxu0
    %v799 = vadd.f32 %v785, %v798
    %v800 = vpop.f32.mrf.mxu0
    %v801 = vadd.f32 %v787, %v800
    %802 = vdwg.mxu0
    %803 = vmatpush.bf16.msra.mxu0 %v562
    %804 = vmatpush.bf16.msra.mxu0 %v560
    %805 = vmatpush.bf16.msra.mxu0 %v558
    %806 = vmatpush.bf16.msra.mxu0 %v556
    %807 = vmatpush.bf16.msra.mxu0 %v554
    %808 = vmatpush.bf16.msra.mxu0 %v552
    %809 = vmatpush.bf16.msra.mxu0 %v550
    %810 = vmatpush.bf16.msra.mxu0 %v548
    %811 = vmatmul.bf16.gmra.mxu0 %v251
    %v812 = vpop.f32.mrf.mxu0
    %v813 = vadd.f32 %v799, %v812
    %v814 = vpop.f32.mrf.mxu0
    %v815 = vadd.f32 %v801, %v814
    %816 = vdwg.mxu0
    %817 = vmatpush.bf16.msra.mxu0 %v578
    %818 = vmatpush.bf16.msra.mxu0 %v576
    %819 = vmatpush.bf16.msra.mxu0 %v574
    %820 = vmatpush.bf16.msra.mxu0 %v572
    %821 = vmatpush.bf16.msra.mxu0 %v570
    %822 = vmatpush.bf16.msra.mxu0 %v568
    %823 = vmatpush.bf16.msra.mxu0 %v566
    %824 = vmatpush.bf16.msra.mxu0 %v564
    %825 = vmatmul.bf16.gmra.mxu0 %v252
    %v826 = vpop.f32.mrf.mxu0
    %v827 = vadd.f32 %v813, %v826
    %v828 = vpop.f32.mrf.mxu0
    %v829 = vadd.f32 %v815, %v828
    %830 = vdwg.mxu0
    %831 = vmatpush.bf16.msra.mxu0 %v531
    %832 = vmatpush.bf16.msra.mxu0 %v529
    %833 = vmatpush.bf16.msra.mxu0 %v527
    %834 = vmatpush.bf16.msra.mxu0 %v525
    %835 = vmatpush.bf16.msra.mxu0 %v523
    %836 = vmatpush.bf16.msra.mxu0 %v521
    %837 = vmatpush.bf16.msra.mxu0 %v519
    %838 = vmatpush.bf16.msra.mxu0 %v517
    %839 = vmatmul.bf16.gmra.mxu0 %v249
    %v840 = vpop.f32.mrf.mxu0
    %v841 = vadd.f32 %v321, %v840
    %v842 = vpop.f32.mrf.mxu0
    %v843 = vadd.f32 %v321, %v842
    %844 = vdwg.mxu0
    %845 = vmatpush.bf16.msra.mxu0 %v547
    %846 = vmatpush.bf16.msra.mxu0 %v545
    %847 = vmatpush.bf16.msra.mxu0 %v543
    %848 = vmatpush.bf16.msra.mxu0 %v541
    %849 = vmatpush.bf16.msra.mxu0 %v539
    %850 = vmatpush.bf16.msra.mxu0 %v537
    %851 = vmatpush.bf16.msra.mxu0 %v535
    %852 = vmatpush.bf16.msra.mxu0 %v533
    %853 = vmatmul.bf16.gmra.mxu0 %v250
    %v854 = vpop.f32.mrf.mxu0
    %v855 = vadd.f32 %v841, %v854
    %v856 = vpop.f32.mrf.mxu0
    %v857 = vadd.f32 %v843, %v856
    %858 = vdwg.mxu0
    %859 = vmatpush.bf16.msra.mxu0 %v563
    %860 = vmatpush.bf16.msra.mxu0 %v561
    %861 = vmatpush.bf16.msra.mxu0 %v559
    %862 = vmatpush.bf16.msra.mxu0 %v557
    %863 = vmatpush.bf16.msra.mxu0 %v555
    %864 = vmatpush.bf16.msra.mxu0 %v553
    %865 = vmatpush.bf16.msra.mxu0 %v551
    %866 = vmatpush.bf16.msra.mxu0 %v549
    %867 = vmatmul.bf16.gmra.mxu0 %v251
    %v868 = vpop.f32.mrf.mxu0
    %v869 = vadd.f32 %v855, %v868
    %v870 = vpop.f32.mrf.mxu0
    %v871 = vadd.f32 %v857, %v870
    %872 = vdwg.mxu0
    %873 = vmatpush.bf16.msra.mxu0 %v579
    %874 = vmatpush.bf16.msra.mxu0 %v577
    %875 = vmatpush.bf16.msra.mxu0 %v575
    %876 = vmatpush.bf16.msra.mxu0 %v573
    %877 = vmatpush.bf16.msra.mxu0 %v571
    %878 = vmatpush.bf16.msra.mxu0 %v569
    %879 = vmatpush.bf16.msra.mxu0 %v567
    %880 = vmatpush.bf16.msra.mxu0 %v565
    %881 = vmatmul.bf16.gmra.mxu0 %v252
    %v882 = vpop.f32.mrf.mxu0
    %v883 = vadd.f32 %v869, %v882
    %v884 = vpop.f32.mrf.mxu0
    %v885 = vadd.f32 %v871, %v884
    %886 = vdwg.mxu0
    %v887 = vmax.f32 %v827, 0.0
    %v888 = vmax.f32 %v883, 0.0
    %v889 = vmax.f32 %v829, 0.0
    %v890 = vmax.f32 %v885, 0.0
    %v891 = vmul.f32 %v887, %v761
    %v892 = vmul.f32 %v888, %v762
    %v893 = vmul.f32 %v889, %v761
    %v894 = vmul.f32 %v890, %v762
    %v895 = vadd.f32 %v891, %v892
    %896 = vadd.xlane.f32.xlu0 %v895
    %v897 = vpop.xlane.xlu0 %896
    %v898 = vadd.f32 %v893, %v894
    %899 = vadd.xlane.f32.xlu0 %v898
    %v900 = vpop.xlane.xlu0 %899
    %v905 = vunpack.c.l.b16 %v233
    %v906 = vunpack.c.h.b16 %v233
    %v907 = vunpack.c.l.b16 %v234
    %v908 = vunpack.c.h.b16 %v234
    %v909 = vunpack.c.l.b16 %v235
    %v910 = vunpack.c.h.b16 %v235
    %v911 = vunpack.c.l.b16 %v236
    %v912 = vunpack.c.h.b16 %v236
    %v913 = vpack.c.b16 %v909, %v905
    %v914 = vpack.c.b16 %v910, %v906
    %v915 = vpack.c.b16 %v911, %v907
    %v916 = vpack.c.b16 %v912, %v908
    %921 = vmatpush.bf16.msra.mxu0 %v530
    %922 = vmatpush.bf16.msra.mxu0 %v528
    %923 = vmatpush.bf16.msra.mxu0 %v526
    %924 = vmatpush.bf16.msra.mxu0 %v524
    %925 = vmatpush.bf16.msra.mxu0 %v522
    %926 = vmatpush.bf16.msra.mxu0 %v520
    %927 = vmatpush.bf16.msra.mxu0 %v518
    %928 = vmatpush.bf16.msra.mxu0 %v516
    %929 = vmatmul.bf16.gmra.mxu0 %v913
    %v930 = vpop.f32.mrf.mxu0
    %v931 = vadd.f32 %v320, %v930
    %v932 = vpop.f32.mrf.mxu0
    %v933 = vadd.f32 %v320, %v932
    %934 = vdwg.mxu0
    %935 = vmatpush.bf16.msra.mxu0 %v546
    %936 = vmatpush.bf16.msra.mxu0 %v544
    %937 = vmatpush.bf16.msra.mxu0 %v542
    %938 = vmatpush.bf16.msra.mxu0 %v540
    %939 = vmatpush.bf16.msra.mxu0 %v538
    %940 = vmatpush.bf16.msra.mxu0 %v536
    %941 = vmatpush.bf16.msra.mxu0 %v534
    %942 = vmatpush.bf16.msra.mxu0 %v532
    %943 = vmatmul.bf16.gmra.mxu0 %v914
    %v944 = vpop.f32.mrf.mxu0
    %v945 = vadd.f32 %v931, %v944
    %v946 = vpop.f32.mrf.mxu0
    %v947 = vadd.f32 %v933, %v946
    %948 = vdwg.mxu0
    %949 = vmatpush.bf16.msra.mxu0 %v562
    %950 = vmatpush.bf16.msra.mxu0 %v560
    %951 = vmatpush.bf16.msra.mxu0 %v558
    %952 = vmatpush.bf16.msra.mxu0 %v556
    %953 = vmatpush.bf16.msra.mxu0 %v554
    %954 = vmatpush.bf16.msra.mxu0 %v552
    %955 = vmatpush.bf16.msra.mxu0 %v550
    %956 = vmatpush.bf16.msra.mxu0 %v548
    %957 = vmatmul.bf16.gmra.mxu0 %v915
    %v958 = vpop.f32.mrf.mxu0
    %v959 = vadd.f32 %v945, %v958
    %v960 = vpop.f32.mrf.mxu0
    %v961 = vadd.f32 %v947, %v960
    %962 = vdwg.mxu0
    %963 = vmatpush.bf16.msra.mxu0 %v578
    %964 = vmatpush.bf16.msra.mxu0 %v576
    %965 = vmatpush.bf16.msra.mxu0 %v574
    %966 = vmatpush.bf16.msra.mxu0 %v572
    %967 = vmatpush.bf16.msra.mxu0 %v570
    %968 = vmatpush.bf16.msra.mxu0 %v568
    %969 = vmatpush.bf16.msra.mxu0 %v566
    %970 = vmatpush.bf16.msra.mxu0 %v564
    %971 = vmatmul.bf16.gmra.mxu0 %v916
    %v972 = vpop.f32.mrf.mxu0
    %v973 = vadd.f32 %v959, %v972
    %v974 = vpop.f32.mrf.mxu0
    %v975 = vadd.f32 %v961, %v974
    %976 = vdwg.mxu0
    %977 = vmatpush.bf16.msra.mxu0 %v531
    %978 = vmatpush.bf16.msra.mxu0 %v529
    %979 = vmatpush.bf16.msra.mxu0 %v527
    %980 = vmatpush.bf16.msra.mxu0 %v525
    %981 = vmatpush.bf16.msra.mxu0 %v523
    %982 = vmatpush.bf16.msra.mxu0 %v521
    %983 = vmatpush.bf16.msra.mxu0 %v519
    %984 = vmatpush.bf16.msra.mxu0 %v517
    %985 = vmatmul.bf16.gmra.mxu0 %v913
    %v986 = vpop.f32.mrf.mxu0
    %v987 = vadd.f32 %v321, %v986
    %v988 = vpop.f32.mrf.mxu0
    %v989 = vadd.f32 %v321, %v988
    %990 = vdwg.mxu0
    %991 = vmatpush.bf16.msra.mxu0 %v547
    %992 = vmatpush.bf16.msra.mxu0 %v545
    %993 = vmatpush.bf16.msra.mxu0 %v543
    %994 = vmatpush.bf16.msra.mxu0 %v541
    %995 = vmatpush.bf16.msra.mxu0 %v539
    %996 = vmatpush.bf16.msra.mxu0 %v537
    %997 = vmatpush.bf16.msra.mxu0 %v535
    %998 = vmatpush.bf16.msra.mxu0 %v533
    %999 = vmatmul.bf16.gmra.mxu0 %v914
    %v1000 = vpop.f32.mrf.mxu0
    %v1001 = vadd.f32 %v987, %v1000
    %v1002 = vpop.f32.mrf.mxu0
    %v1003 = vadd.f32 %v989, %v1002
    %1004 = vdwg.mxu0
    %1005 = vmatpush.bf16.msra.mxu0 %v563
    %1006 = vmatpush.bf16.msra.mxu0 %v561
    %1007 = vmatpush.bf16.msra.mxu0 %v559
    %1008 = vmatpush.bf16.msra.mxu0 %v557
    %1009 = vmatpush.bf16.msra.mxu0 %v555
    %1010 = vmatpush.bf16.msra.mxu0 %v553
    %1011 = vmatpush.bf16.msra.mxu0 %v551
    %1012 = vmatpush.bf16.msra.mxu0 %v549
    %1013 = vmatmul.bf16.gmra.mxu0 %v915
    %v1014 = vpop.f32.mrf.mxu0
    %v1015 = vadd.f32 %v1001, %v1014
    %v1016 = vpop.f32.mrf.mxu0
    %v1017 = vadd.f32 %v1003, %v1016
    %1018 = vdwg.mxu0
    %1019 = vmatpush.bf16.msra.mxu0 %v579
    %1020 = vmatpush.bf16.msra.mxu0 %v577
    %1021 = vmatpush.bf16.msra.mxu0 %v575
    %1022 = vmatpush.bf16.msra.mxu0 %v573
    %1023 = vmatpush.bf16.msra.mxu0 %v571
    %1024 = vmatpush.bf16.msra.mxu0 %v569
    %1025 = vmatpush.bf16.msra.mxu0 %v567
    %1026 = vmatpush.bf16.msra.mxu0 %v565
    %1027 = vmatmul.bf16.gmra.mxu0 %v916
    %v1028 = vpop.f32.mrf.mxu0
    %v1029 = vadd.f32 %v1015, %v1028
    %v1030 = vpop.f32.mrf.mxu0
    %v1031 = vadd.f32 %v1017, %v1030
    %1032 = vdwg.mxu0
    %v1033 = vmax.f32 %v973, 0.0
    %v1034 = vmax.f32 %v1029, 0.0
    %v1035 = vmax.f32 %v975, 0.0
    %v1036 = vmax.f32 %v1031, 0.0
    %v1037 = vmul.f32 %v1033, %v761
    %v1038 = vmul.f32 %v1034, %v762
    %v1039 = vmul.f32 %v1035, %v761
    %v1040 = vmul.f32 %v1036, %v762
    %v1041 = vadd.f32 %v1037, %v1038
    %1042 = vadd.xlane.f32.xlu0 %v1041
    %v1043 = vpop.xlane.xlu0 %1042
    %v1044 = vadd.f32 %v1039, %v1040
    %1045 = vadd.xlane.f32.xlu0 %v1044
    %v1046 = vpop.xlane.xlu0 %1045
    %v1047 = vmax.f32 %v771, %v897
    %v1048 = vmax.f32 %v774, %v900
    %v1049 = vmax.f32 %v1047, %v1043
    %v1050 = vmax.f32 %v1048, %v1046
    %v1051 = vsub.f32 %v771, %v1049
    %v1052 = vsub.f32 %v774, %v1050
    %v1053 = vmul.f32 %v1051, 1.442695
    %v1054 = vpow.pop %v1053
    %v1055 = vmul.f32 %v1052, 1.442695
    %v1056 = vpow.pop %v1055
    %v1057 = vsub.f32 %v897, %v1049
    %v1058 = vsub.f32 %v900, %v1050
    %v1059 = vmul.f32 %v1057, 1.442695
    %v1060 = vpow.pop %v1059
    %v1061 = vmul.f32 %v1058, 1.442695
    %v1062 = vpow.pop %v1061
    %v1063 = vsub.f32 %v1043, %v1049
    %v1064 = vsub.f32 %v1046, %v1050
    %v1065 = vmul.f32 %v1063, 1.442695
    %v1066 = vpow.pop %v1065
    %v1067 = vmul.f32 %v1064, 1.442695
    %v1068 = vpow.pop %v1067
    %v1069 = vadd.f32 %v1054, %v1060
    %v1070 = vadd.f32 %v1056, %v1062
    %v1071 = vadd.f32 %v1069, %v1066
    %v1072 = vadd.f32 %v1070, %v1068
    %v1073 = vrcp.pop %v1071
    %v1074 = vrcp.pop %v1072
    %v1075 = vmul.f32 %v1054, %v197
    %v1076 = vmul.f32 %v1054, %v198
    %v1077 = vmul.f32 %v1054, %v199
    %v1078 = vmul.f32 %v1054, %v200
    %v1079 = vmul.f32 %v1056, %v201
    %v1080 = vmul.f32 %v1056, %v202
    %v1081 = vmul.f32 %v1056, %v203
    %v1082 = vmul.f32 %v1056, %v204
    %v1083 = vmul.f32 %v1060, %v225
    %v1084 = vmul.f32 %v1060, %v226
    %v1085 = vmul.f32 %v1060, %v227
    %v1086 = vmul.f32 %v1060, %v228
    %v1087 = vmul.f32 %v1062, %v229
    %v1088 = vmul.f32 %v1062, %v230
    %v1089 = vmul.f32 %v1062, %v231
    %v1090 = vmul.f32 %v1062, %v232
    %v1091 = vadd.f32 %v1075, %v1083
    %v1092 = vadd.f32 %v1076, %v1084
    %v1093 = vadd.f32 %v1077, %v1085
    %v1094 = vadd.f32 %v1078, %v1086
    %v1095 = vadd.f32 %v1079, %v1087
    %v1096 = vadd.f32 %v1080, %v1088
    %v1097 = vadd.f32 %v1081, %v1089
    %v1098 = vadd.f32 %v1082, %v1090
    %v1099 = vmul.f32 %v1066, %v237
    %v1100 = vmul.f32 %v1066, %v238
    %v1101 = vmul.f32 %v1066, %v239
    %v1102 = vmul.f32 %v1066, %v240
    %v1103 = vmul.f32 %v1068, %v241
    %v1104 = vmul.f32 %v1068, %v242
    %v1105 = vmul.f32 %v1068, %v243
    %v1106 = vmul.f32 %v1068, %v244
    %v1107 = vadd.f32 %v1091, %v1099
    %v1108 = vadd.f32 %v1092, %v1100
    %v1109 = vadd.f32 %v1093, %v1101
    %v1110 = vadd.f32 %v1094, %v1102
    %v1111 = vadd.f32 %v1095, %v1103
    %v1112 = vadd.f32 %v1096, %v1104
    %v1113 = vadd.f32 %v1097, %v1105
    %v1114 = vadd.f32 %v1098, %v1106
    %v1115 = vmul.f32 %v1107, %v1073
    %v1116 = vmul.f32 %v1108, %v1073
    %v1117 = vmul.f32 %v1109, %v1073
    %v1118 = vmul.f32 %v1110, %v1073
    %v1119 = vmul.f32 %v1111, %v1074
    %v1120 = vmul.f32 %v1112, %v1074
    %v1121 = vmul.f32 %v1113, %v1074
    %v1122 = vmul.f32 %v1114, %v1074
    %v1123 = vpack.c.bf16 %v1119, %v1115
    %v1124 = vpack.c.bf16 %v1120, %v1116
    %v1125 = vpack.c.bf16 %v1121, %v1117
    %v1126 = vpack.c.bf16 %v1122, %v1118
    %v1127 = vld [vmem:[#allocation10] sm:$0xff]
    %v1128 = vld [vmem:[#allocation10 + $0x8] sm:$0xff]
    %v1129 = vld [vmem:[#allocation10 + $0x10] sm:$0xff]
    %v1130 = vld [vmem:[#allocation10 + $0x18] sm:$0xff]
    %v1131 = vld [vmem:[#allocation10 + $0x20] sm:$0xff]
    %v1132 = vld [vmem:[#allocation10 + $0x28] sm:$0xff]
    %v1133 = vld [vmem:[#allocation10 + $0x30] sm:$0xff]
    %v1134 = vld [vmem:[#allocation10 + $0x38] sm:$0xff]
    %v1135 = vld [vmem:[#allocation10 + $0x40] sm:$0xff]
    %v1136 = vld [vmem:[#allocation10 + $0x48] sm:$0xff]
    %v1137 = vld [vmem:[#allocation10 + $0x50] sm:$0xff]
    %v1138 = vld [vmem:[#allocation10 + $0x58] sm:$0xff]
    %v1139 = vld [vmem:[#allocation10 + $0x60] sm:$0xff]
    %v1140 = vld [vmem:[#allocation10 + $0x68] sm:$0xff]
    %v1141 = vld [vmem:[#allocation10 + $0x70] sm:$0xff]
    %v1142 = vld [vmem:[#allocation10 + $0x78] sm:$0xff]
    %v1143 = vld [vmem:[#allocation10 + $0x80] sm:$0xff]
    %v1144 = vld [vmem:[#allocation10 + $0x88] sm:$0xff]
    %v1145 = vld [vmem:[#allocation10 + $0x90] sm:$0xff]
    %v1146 = vld [vmem:[#allocation10 + $0x98] sm:$0xff]
    %v1147 = vld [vmem:[#allocation10 + $0xa0] sm:$0xff]
    %v1148 = vld [vmem:[#allocation10 + $0xa8] sm:$0xff]
    %v1149 = vld [vmem:[#allocation10 + $0xb0] sm:$0xff]
    %v1150 = vld [vmem:[#allocation10 + $0xb8] sm:$0xff]
    %v1151 = vld [vmem:[#allocation10 + $0xc0] sm:$0xff]
    %v1152 = vld [vmem:[#allocation10 + $0xc8] sm:$0xff]
    %v1153 = vld [vmem:[#allocation10 + $0xd0] sm:$0xff]
    %v1154 = vld [vmem:[#allocation10 + $0xd8] sm:$0xff]
    %v1155 = vld [vmem:[#allocation10 + $0xe0] sm:$0xff]
    %v1156 = vld [vmem:[#allocation10 + $0xe8] sm:$0xff]
    %v1157 = vld [vmem:[#allocation10 + $0xf0] sm:$0xff]
    %v1158 = vld [vmem:[#allocation10 + $0xf8] sm:$0xff]
    %v1159 = vld [vmem:[#allocation10 + $0x100] sm:$0xff]
    %v1160 = vld [vmem:[#allocation10 + $0x108] sm:$0xff]
    %v1161 = vld [vmem:[#allocation10 + $0x110] sm:$0xff]
    %v1162 = vld [vmem:[#allocation10 + $0x118] sm:$0xff]
    %v1163 = vld [vmem:[#allocation10 + $0x120] sm:$0xff]
    %v1164 = vld [vmem:[#allocation10 + $0x128] sm:$0xff]
    %v1165 = vld [vmem:[#allocation10 + $0x130] sm:$0xff]
    %v1166 = vld [vmem:[#allocation10 + $0x138] sm:$0xff]
    %v1167 = vld [vmem:[#allocation10 + $0x140] sm:$0xff]
    %v1168 = vld [vmem:[#allocation10 + $0x148] sm:$0xff]
    %v1169 = vld [vmem:[#allocation10 + $0x150] sm:$0xff]
    %v1170 = vld [vmem:[#allocation10 + $0x158] sm:$0xff]
    %v1171 = vld [vmem:[#allocation10 + $0x160] sm:$0xff]
    %v1172 = vld [vmem:[#allocation10 + $0x168] sm:$0xff]
    %v1173 = vld [vmem:[#allocation10 + $0x170] sm:$0xff]
    %v1174 = vld [vmem:[#allocation10 + $0x178] sm:$0xff]
    %v1175 = vld [vmem:[#allocation10 + $0x180] sm:$0xff]
    %v1176 = vld [vmem:[#allocation10 + $0x188] sm:$0xff]
    %v1177 = vld [vmem:[#allocation10 + $0x190] sm:$0xff]
    %v1178 = vld [vmem:[#allocation10 + $0x198] sm:$0xff]
    %v1179 = vld [vmem:[#allocation10 + $0x1a0] sm:$0xff]
    %v1180 = vld [vmem:[#allocation10 + $0x1a8] sm:$0xff]
    %v1181 = vld [vmem:[#allocation10 + $0x1b0] sm:$0xff]
    %v1182 = vld [vmem:[#allocation10 + $0x1b8] sm:$0xff]
    %v1183 = vld [vmem:[#allocation10 + $0x1c0] sm:$0xff]
    %v1184 = vld [vmem:[#allocation10 + $0x1c8] sm:$0xff]
    %v1185 = vld [vmem:[#allocation10 + $0x1d0] sm:$0xff]
    %v1186 = vld [vmem:[#allocation10 + $0x1d8] sm:$0xff]
    %v1187 = vld [vmem:[#allocation10 + $0x1e0] sm:$0xff]
    %v1188 = vld [vmem:[#allocation10 + $0x1e8] sm:$0xff]
    %v1189 = vld [vmem:[#allocation10 + $0x1f0] sm:$0xff]
    %v1190 = vld [vmem:[#allocation10 + $0x1f8] sm:$0xff]
    %v1191 = vld [vmem:[%s8] sm:$0x3]
    %v1193 = vperm.slane %v1191, 0
    %v1194 = vperm.slane %v1191, 1
    %v1261 = vunpack.c.l.b16 %v1127
    %v1262 = vunpack.c.h.b16 %v1127
    %v1263 = vunpack.c.l.b16 %v1128
    %v1264 = vunpack.c.h.b16 %v1128
    %v1265 = vunpack.c.l.b16 %v1129
    %v1266 = vunpack.c.h.b16 %v1129
    %v1267 = vunpack.c.l.b16 %v1130
    %v1268 = vunpack.c.h.b16 %v1130
    %v1269 = vunpack.c.l.b16 %v1131
    %v1270 = vunpack.c.h.b16 %v1131
    %v1271 = vunpack.c.l.b16 %v1132
    %v1272 = vunpack.c.h.b16 %v1132
    %v1273 = vunpack.c.l.b16 %v1133
    %v1274 = vunpack.c.h.b16 %v1133
    %v1275 = vunpack.c.l.b16 %v1134
    %v1276 = vunpack.c.h.b16 %v1134
    %v1277 = vunpack.c.l.b16 %v1135
    %v1278 = vunpack.c.h.b16 %v1135
    %v1279 = vunpack.c.l.b16 %v1136
    %v1280 = vunpack.c.h.b16 %v1136
    %v1281 = vunpack.c.l.b16 %v1137
    %v1282 = vunpack.c.h.b16 %v1137
    %v1283 = vunpack.c.l.b16 %v1138
    %v1284 = vunpack.c.h.b16 %v1138
    %v1285 = vunpack.c.l.b16 %v1139
    %v1286 = vunpack.c.h.b16 %v1139
    %v1287 = vunpack.c.l.b16 %v1140
    %v1288 = vunpack.c.h.b16 %v1140
    %v1289 = vunpack.c.l.b16 %v1141
    %v1290 = vunpack.c.h.b16 %v1141
    %v1291 = vunpack.c.l.b16 %v1142
    %v1292 = vunpack.c.h.b16 %v1142
    %v1293 = vunpack.c.l.b16 %v1143
    %v1294 = vunpack.c.h.b16 %v1143
    %v1295 = vunpack.c.l.b16 %v1144
    %v1296 = vunpack.c.h.b16 %v1144
    %v1297 = vunpack.c.l.b16 %v1145
    %v1298 = vunpack.c.h.b16 %v1145
    %v1299 = vunpack.c.l.b16 %v1146
    %v1300 = vunpack.c.h.b16 %v1146
    %v1301 = vunpack.c.l.b16 %v1147
    %v1302 = vunpack.c.h.b16 %v1147
    %v1303 = vunpack.c.l.b16 %v1148
    %v1304 = vunpack.c.h.b16 %v1148
    %v1305 = vunpack.c.l.b16 %v1149
    %v1306 = vunpack.c.h.b16 %v1149
    %v1307 = vunpack.c.l.b16 %v1150
    %v1308 = vunpack.c.h.b16 %v1150
    %v1309 = vunpack.c.l.b16 %v1151
    %v1310 = vunpack.c.h.b16 %v1151
    %v1311 = vunpack.c.l.b16 %v1152
    %v1312 = vunpack.c.h.b16 %v1152
    %v1313 = vunpack.c.l.b16 %v1153
    %v1314 = vunpack.c.h.b16 %v1153
    %v1315 = vunpack.c.l.b16 %v1154
    %v1316 = vunpack.c.h.b16 %v1154
    %v1317 = vunpack.c.l.b16 %v1155
    %v1318 = vunpack.c.h.b16 %v1155
    %v1319 = vunpack.c.l.b16 %v1156
    %v1320 = vunpack.c.h.b16 %v1156
    %v1321 = vunpack.c.l.b16 %v1157
    %v1322 = vunpack.c.h.b16 %v1157
    %v1323 = vunpack.c.l.b16 %v1158
    %v1324 = vunpack.c.h.b16 %v1158
    %v1325 = vunpack.c.l.b16 %v1159
    %v1326 = vunpack.c.h.b16 %v1159
    %v1327 = vunpack.c.l.b16 %v1160
    %v1328 = vunpack.c.h.b16 %v1160
    %v1329 = vunpack.c.l.b16 %v1161
    %v1330 = vunpack.c.h.b16 %v1161
    %v1331 = vunpack.c.l.b16 %v1162
    %v1332 = vunpack.c.h.b16 %v1162
    %v1333 = vunpack.c.l.b16 %v1163
    %v1334 = vunpack.c.h.b16 %v1163
    %v1335 = vunpack.c.l.b16 %v1164
    %v1336 = vunpack.c.h.b16 %v1164
    %v1337 = vunpack.c.l.b16 %v1165
    %v1338 = vunpack.c.h.b16 %v1165
    %v1339 = vunpack.c.l.b16 %v1166
    %v1340 = vunpack.c.h.b16 %v1166
    %v1341 = vunpack.c.l.b16 %v1167
    %v1342 = vunpack.c.h.b16 %v1167
    %v1343 = vunpack.c.l.b16 %v1168
    %v1344 = vunpack.c.h.b16 %v1168
    %v1345 = vunpack.c.l.b16 %v1169
    %v1346 = vunpack.c.h.b16 %v1169
    %v1347 = vunpack.c.l.b16 %v1170
    %v1348 = vunpack.c.h.b16 %v1170
    %v1349 = vunpack.c.l.b16 %v1171
    %v1350 = vunpack.c.h.b16 %v1171
    %v1351 = vunpack.c.l.b16 %v1172
    %v1352 = vunpack.c.h.b16 %v1172
    %v1353 = vunpack.c.l.b16 %v1173
    %v1354 = vunpack.c.h.b16 %v1173
    %v1355 = vunpack.c.l.b16 %v1174
    %v1356 = vunpack.c.h.b16 %v1174
    %v1357 = vunpack.c.l.b16 %v1175
    %v1358 = vunpack.c.h.b16 %v1175
    %v1359 = vunpack.c.l.b16 %v1176
    %v1360 = vunpack.c.h.b16 %v1176
    %v1361 = vunpack.c.l.b16 %v1177
    %v1362 = vunpack.c.h.b16 %v1177
    %v1363 = vunpack.c.l.b16 %v1178
    %v1364 = vunpack.c.h.b16 %v1178
    %v1365 = vunpack.c.l.b16 %v1179
    %v1366 = vunpack.c.h.b16 %v1179
    %v1367 = vunpack.c.l.b16 %v1180
    %v1368 = vunpack.c.h.b16 %v1180
    %v1369 = vunpack.c.l.b16 %v1181
    %v1370 = vunpack.c.h.b16 %v1181
    %v1371 = vunpack.c.l.b16 %v1182
    %v1372 = vunpack.c.h.b16 %v1182
    %v1373 = vunpack.c.l.b16 %v1183
    %v1374 = vunpack.c.h.b16 %v1183
    %v1375 = vunpack.c.l.b16 %v1184
    %v1376 = vunpack.c.h.b16 %v1184
    %v1377 = vunpack.c.l.b16 %v1185
    %v1378 = vunpack.c.h.b16 %v1185
    %v1379 = vunpack.c.l.b16 %v1186
    %v1380 = vunpack.c.h.b16 %v1186
    %v1381 = vunpack.c.l.b16 %v1187
    %v1382 = vunpack.c.h.b16 %v1187
    %v1383 = vunpack.c.l.b16 %v1188
    %v1384 = vunpack.c.h.b16 %v1188
    %v1385 = vunpack.c.l.b16 %v1189
    %v1386 = vunpack.c.h.b16 %v1189
    %v1387 = vunpack.c.l.b16 %v1190
    %v1388 = vunpack.c.h.b16 %v1190
    %v1389 = vpack.c.b16 %v1263, %v1261
    %v1390 = vpack.c.b16 %v1264, %v1262
    %v1391 = vpack.c.b16 %v1267, %v1265
    %v1392 = vpack.c.b16 %v1268, %v1266
    %v1393 = vpack.c.b16 %v1271, %v1269
    %v1394 = vpack.c.b16 %v1272, %v1270
    %v1395 = vpack.c.b16 %v1275, %v1273
    %v1396 = vpack.c.b16 %v1276, %v1274
    %v1397 = vpack.c.b16 %v1279, %v1277
    %v1398 = vpack.c.b16 %v1280, %v1278
    %v1399 = vpack.c.b16 %v1283, %v1281
    %v1400 = vpack.c.b16 %v1284, %v1282
    %v1401 = vpack.c.b16 %v1287, %v1285
    %v1402 = vpack.c.b16 %v1288, %v1286
    %v1403 = vpack.c.b16 %v1291, %v1289
    %v1404 = vpack.c.b16 %v1292, %v1290
    %v1405 = vpack.c.b16 %v1295, %v1293
    %v1406 = vpack.c.b16 %v1296, %v1294
    %v1407 = vpack.c.b16 %v1299, %v1297
    %v1408 = vpack.c.b16 %v1300, %v1298
    %v1409 = vpack.c.b16 %v1303, %v1301
    %v1410 = vpack.c.b16 %v1304, %v1302
    %v1411 = vpack.c.b16 %v1307, %v1305
    %v1412 = vpack.c.b16 %v1308, %v1306
    %v1413 = vpack.c.b16 %v1311, %v1309
    %v1414 = vpack.c.b16 %v1312, %v1310
    %v1415 = vpack.c.b16 %v1315, %v1313
    %v1416 = vpack.c.b16 %v1316, %v1314
    %v1417 = vpack.c.b16 %v1319, %v1317
    %v1418 = vpack.c.b16 %v1320, %v1318
    %v1419 = vpack.c.b16 %v1323, %v1321
    %v1420 = vpack.c.b16 %v1324, %v1322
    %v1421 = vpack.c.b16 %v1327, %v1325
    %v1422 = vpack.c.b16 %v1328, %v1326
    %v1423 = vpack.c.b16 %v1331, %v1329
    %v1424 = vpack.c.b16 %v1332, %v1330
    %v1425 = vpack.c.b16 %v1335, %v1333
    %v1426 = vpack.c.b16 %v1336, %v1334
    %v1427 = vpack.c.b16 %v1339, %v1337
    %v1428 = vpack.c.b16 %v1340, %v1338
    %v1429 = vpack.c.b16 %v1343, %v1341
    %v1430 = vpack.c.b16 %v1344, %v1342
    %v1431 = vpack.c.b16 %v1347, %v1345
    %v1432 = vpack.c.b16 %v1348, %v1346
    %v1433 = vpack.c.b16 %v1351, %v1349
    %v1434 = vpack.c.b16 %v1352, %v1350
    %v1435 = vpack.c.b16 %v1355, %v1353
    %v1436 = vpack.c.b16 %v1356, %v1354
    %v1437 = vpack.c.b16 %v1359, %v1357
    %v1438 = vpack.c.b16 %v1360, %v1358
    %v1439 = vpack.c.b16 %v1363, %v1361
    %v1440 = vpack.c.b16 %v1364, %v1362
    %v1441 = vpack.c.b16 %v1367, %v1365
    %v1442 = vpack.c.b16 %v1368, %v1366
    %v1443 = vpack.c.b16 %v1371, %v1369
    %v1444 = vpack.c.b16 %v1372, %v1370
    %v1445 = vpack.c.b16 %v1375, %v1373
    %v1446 = vpack.c.b16 %v1376, %v1374
    %v1447 = vpack.c.b16 %v1379, %v1377
    %v1448 = vpack.c.b16 %v1380, %v1378
    %v1449 = vpack.c.b16 %v1383, %v1381
    %v1450 = vpack.c.b16 %v1384, %v1382
    %v1451 = vpack.c.b16 %v1387, %v1385
    %v1452 = vpack.c.b16 %v1388, %v1386
    %1517 = vmatpush.bf16.msra.mxu0 %v1403
    %1518 = vmatpush.bf16.msra.mxu0 %v1401
    %1519 = vmatpush.bf16.msra.mxu0 %v1399
    %1520 = vmatpush.bf16.msra.mxu0 %v1397
    %1521 = vmatpush.bf16.msra.mxu0 %v1395
    %1522 = vmatpush.bf16.msra.mxu0 %v1393
    %1523 = vmatpush.bf16.msra.mxu0 %v1391
    %1524 = vmatpush.bf16.msra.mxu0 %v1389
    %1525 = vmatmul.bf16.gmra.mxu0 %v1123
    %v1526 = vpop.f32.mrf.mxu0
    %v1527 = vadd.f32 %v1193, %v1526
    %v1528 = vpop.f32.mrf.mxu0
    %v1529 = vadd.f32 %v1193, %v1528
    %1530 = vdwg.mxu0
    %1531 = vmatpush.bf16.msra.mxu0 %v1419
    %1532 = vmatpush.bf16.msra.mxu0 %v1417
    %1533 = vmatpush.bf16.msra.mxu0 %v1415
    %1534 = vmatpush.bf16.msra.mxu0 %v1413
    %1535 = vmatpush.bf16.msra.mxu0 %v1411
    %1536 = vmatpush.bf16.msra.mxu0 %v1409
    %1537 = vmatpush.bf16.msra.mxu0 %v1407
    %1538 = vmatpush.bf16.msra.mxu0 %v1405
    %1539 = vmatmul.bf16.gmra.mxu0 %v1124
    %v1540 = vpop.f32.mrf.mxu0
    %v1541 = vadd.f32 %v1527, %v1540
    %v1542 = vpop.f32.mrf.mxu0
    %v1543 = vadd.f32 %v1529, %v1542
    %1544 = vdwg.mxu0
    %1545 = vmatpush.bf16.msra.mxu0 %v1435
    %1546 = vmatpush.bf16.msra.mxu0 %v1433
    %1547 = vmatpush.bf16.msra.mxu0 %v1431
    %1548 = vmatpush.bf16.msra.mxu0 %v1429
    %1549 = vmatpush.bf16.msra.mxu0 %v1427
    %1550 = vmatpush.bf16.msra.mxu0 %v1425
    %1551 = vmatpush.bf16.msra.mxu0 %v1423
    %1552 = vmatpush.bf16.msra.mxu0 %v1421
    %1553 = vmatmul.bf16.gmra.mxu0 %v1125
    %v1554 = vpop.f32.mrf.mxu0
    %v1555 = vadd.f32 %v1541, %v1554
    %v1556 = vpop.f32.mrf.mxu0
    %v1557 = vadd.f32 %v1543, %v1556
    %1558 = vdwg.mxu0
    %1559 = vmatpush.bf16.msra.mxu0 %v1451
    %1560 = vmatpush.bf16.msra.mxu0 %v1449
    %1561 = vmatpush.bf16.msra.mxu0 %v1447
    %1562 = vmatpush.bf16.msra.mxu0 %v1445
    %1563 = vmatpush.bf16.msra.mxu0 %v1443
    %1564 = vmatpush.bf16.msra.mxu0 %v1441
    %1565 = vmatpush.bf16.msra.mxu0 %v1439
    %1566 = vmatpush.bf16.msra.mxu0 %v1437
    %1567 = vmatmul.bf16.gmra.mxu0 %v1126
    %v1568 = vpop.f32.mrf.mxu0
    %v1569 = vadd.f32 %v1555, %v1568
    %v1570 = vpop.f32.mrf.mxu0
    %v1571 = vadd.f32 %v1557, %v1570
    %1572 = vdwg.mxu0
    %1573 = vmatpush.bf16.msra.mxu0 %v1404
    %1574 = vmatpush.bf16.msra.mxu0 %v1402
    %1575 = vmatpush.bf16.msra.mxu0 %v1400
    %1576 = vmatpush.bf16.msra.mxu0 %v1398
    %1577 = vmatpush.bf16.msra.mxu0 %v1396
    %1578 = vmatpush.bf16.msra.mxu0 %v1394
    %1579 = vmatpush.bf16.msra.mxu0 %v1392
    %1580 = vmatpush.bf16.msra.mxu0 %v1390
    %1581 = vmatmul.bf16.gmra.mxu0 %v1123
    %v1582 = vpop.f32.mrf.mxu0
    %v1583 = vadd.f32 %v1194, %v1582
    %v1584 = vpop.f32.mrf.mxu0
    %v1585 = vadd.f32 %v1194, %v1584
    %1586 = vdwg.mxu0
    %1587 = vmatpush.bf16.msra.mxu0 %v1420
    %1588 = vmatpush.bf16.msra.mxu0 %v1418
    %1589 = vmatpush.bf16.msra.mxu0 %v1416
    %1590 = vmatpush.bf16.msra.mxu0 %v1414
    %1591 = vmatpush.bf16.msra.mxu0 %v1412
    %1592 = vmatpush.bf16.msra.mxu0 %v1410
    %1593 = vmatpush.bf16.msra.mxu0 %v1408
    %1594 = vmatpush.bf16.msra.mxu0 %v1406
    %1595 = vmatmul.bf16.gmra.mxu0 %v1124
    %v1596 = vpop.f32.mrf.mxu0
    %v1597 = vadd.f32 %v1583, %v1596
    %v1598 = vpop.f32.mrf.mxu0
    %v1599 = vadd.f32 %v1585, %v1598
    %1600 = vdwg.mxu0
    %1601 = vmatpush.bf16.msra.mxu0 %v1436
    %1602 = vmatpush.bf16.msra.mxu0 %v1434
    %1603 = vmatpush.bf16.msra.mxu0 %v1432
    %1604 = vmatpush.bf16.msra.mxu0 %v1430
    %1605 = vmatpush.bf16.msra.mxu0 %v1428
    %1606 = vmatpush.bf16.msra.mxu0 %v1426
    %1607 = vmatpush.bf16.msra.mxu0 %v1424
    %1608 = vmatpush.bf16.msra.mxu0 %v1422
    %1609 = vmatmul.bf16.gmra.mxu0 %v1125
    %v1610 = vpop.f32.mrf.mxu0
    %v1611 = vadd.f32 %v1597, %v1610
    %v1612 = vpop.f32.mrf.mxu0
    %v1613 = vadd.f32 %v1599, %v1612
    %1614 = vdwg.mxu0
    %1615 = vmatpush.bf16.msra.mxu0 %v1452
    %1616 = vmatpush.bf16.msra.mxu0 %v1450
    %1617 = vmatpush.bf16.msra.mxu0 %v1448
    %1618 = vmatpush.bf16.msra.mxu0 %v1446
    %1619 = vmatpush.bf16.msra.mxu0 %v1444
    %1620 = vmatpush.bf16.msra.mxu0 %v1442
    %1621 = vmatpush.bf16.msra.mxu0 %v1440
    %1622 = vmatpush.bf16.msra.mxu0 %v1438
    %1623 = vmatmul.bf16.gmra.mxu0 %v1126
    %v1624 = vpop.f32.mrf.mxu0
    %v1625 = vadd.f32 %v1611, %v1624
    %v1626 = vpop.f32.mrf.mxu0
    %v1627 = vadd.f32 %v1613, %v1626
    %1628 = vdwg.mxu0
    %v1629 = vmax.f32 %v1569, 0.0
    %v1630 = vmax.f32 %v1625, 0.0
    %v1631 = vmax.f32 %v1571, 0.0
    %v1632 = vmax.f32 %v1627, 0.0
    %v1633 = vld [vmem:[#allocation11] sm:$0xff]
    %v1634 = vld [vmem:[#allocation11 + $0x8] sm:$0xff]
    %v1635 = vld [vmem:[#allocation11 + $0x10] sm:$0xff]
    %v1636 = vld [vmem:[#allocation11 + $0x18] sm:$0xff]
    %v1637 = vld [vmem:[#allocation11 + $0x20] sm:$0xff]
    %v1638 = vld [vmem:[#allocation11 + $0x28] sm:$0xff]
    %v1639 = vld [vmem:[#allocation11 + $0x30] sm:$0xff]
    %v1640 = vld [vmem:[#allocation11 + $0x38] sm:$0xff]
    %v1641 = vld [vmem:[#allocation11 + $0x40] sm:$0xff]
    %v1642 = vld [vmem:[#allocation11 + $0x48] sm:$0xff]
    %v1643 = vld [vmem:[#allocation11 + $0x50] sm:$0xff]
    %v1644 = vld [vmem:[#allocation11 + $0x58] sm:$0xff]
    %v1645 = vld [vmem:[#allocation11 + $0x60] sm:$0xff]
    %v1646 = vld [vmem:[#allocation11 + $0x68] sm:$0xff]
    %v1647 = vld [vmem:[#allocation11 + $0x70] sm:$0xff]
    %v1648 = vld [vmem:[#allocation11 + $0x78] sm:$0xff]
    %v1649 = vld [vmem:[#allocation11 + $0x80] sm:$0xff]
    %v1650 = vld [vmem:[#allocation11 + $0x88] sm:$0xff]
    %v1651 = vld [vmem:[#allocation11 + $0x90] sm:$0xff]
    %v1652 = vld [vmem:[#allocation11 + $0x98] sm:$0xff]
    %v1653 = vld [vmem:[#allocation11 + $0xa0] sm:$0xff]
    %v1654 = vld [vmem:[#allocation11 + $0xa8] sm:$0xff]
    %v1655 = vld [vmem:[#allocation11 + $0xb0] sm:$0xff]
    %v1656 = vld [vmem:[#allocation11 + $0xb8] sm:$0xff]
    %v1657 = vld [vmem:[#allocation11 + $0xc0] sm:$0xff]
    %v1658 = vld [vmem:[#allocation11 + $0xc8] sm:$0xff]
    %v1659 = vld [vmem:[#allocation11 + $0xd0] sm:$0xff]
    %v1660 = vld [vmem:[#allocation11 + $0xd8] sm:$0xff]
    %v1661 = vld [vmem:[#allocation11 + $0xe0] sm:$0xff]
    %v1662 = vld [vmem:[#allocation11 + $0xe8] sm:$0xff]
    %v1663 = vld [vmem:[#allocation11 + $0xf0] sm:$0xff]
    %v1664 = vld [vmem:[#allocation11 + $0xf8] sm:$0xff]
    %v1665 = vld [vmem:[#allocation11 + $0x100] sm:$0xff]
    %v1666 = vld [vmem:[#allocation11 + $0x108] sm:$0xff]
    %v1667 = vld [vmem:[#allocation11 + $0x110] sm:$0xff]
    %v1668 = vld [vmem:[#allocation11 + $0x118] sm:$0xff]
    %v1669 = vld [vmem:[#allocation11 + $0x120] sm:$0xff]
    %v1670 = vld [vmem:[#allocation11 + $0x128] sm:$0xff]
    %v1671 = vld [vmem:[#allocation11 + $0x130] sm:$0xff]
    %v1672 = vld [vmem:[#allocation11 + $0x138] sm:$0xff]
    %v1673 = vld [vmem:[#allocation11 + $0x140] sm:$0xff]
    %v1674 = vld [vmem:[#allocation11 + $0x148] sm:$0xff]
    %v1675 = vld [vmem:[#allocation11 + $0x150] sm:$0xff]
    %v1676 = vld [vmem:[#allocation11 + $0x158] sm:$0xff]
    %v1677 = vld [vmem:[#allocation11 + $0x160] sm:$0xff]
    %v1678 = vld [vmem:[#allocation11 + $0x168] sm:$0xff]
    %v1679 = vld [vmem:[#allocation11 + $0x170] sm:$0xff]
    %v1680 = vld [vmem:[#allocation11 + $0x178] sm:$0xff]
    %v1681 = vld [vmem:[#allocation11 + $0x180] sm:$0xff]
    %v1682 = vld [vmem:[#allocation11 + $0x188] sm:$0xff]
    %v1683 = vld [vmem:[#allocation11 + $0x190] sm:$0xff]
    %v1684 = vld [vmem:[#allocation11 + $0x198] sm:$0xff]
    %v1685 = vld [vmem:[#allocation11 + $0x1a0] sm:$0xff]
    %v1686 = vld [vmem:[#allocation11 + $0x1a8] sm:$0xff]
    %v1687 = vld [vmem:[#allocation11 + $0x1b0] sm:$0xff]
    %v1688 = vld [vmem:[#allocation11 + $0x1b8] sm:$0xff]
    %v1689 = vld [vmem:[#allocation11 + $0x1c0] sm:$0xff]
    %v1690 = vld [vmem:[#allocation11 + $0x1c8] sm:$0xff]
    %v1691 = vld [vmem:[#allocation11 + $0x1d0] sm:$0xff]
    %v1692 = vld [vmem:[#allocation11 + $0x1d8] sm:$0xff]
    %v1693 = vld [vmem:[#allocation11 + $0x1e0] sm:$0xff]
    %v1694 = vld [vmem:[#allocation11 + $0x1e8] sm:$0xff]
    %v1695 = vld [vmem:[#allocation11 + $0x1f0] sm:$0xff]
    %v1696 = vld [vmem:[#allocation11 + $0x1f8] sm:$0xff]
    %v1697 = vld [vmem:[%s10] sm:$0x3]
    %v1699 = vperm.slane %v1697, 0
    %v1700 = vperm.slane %v1697, 1
    %v1767 = vunpack.c.l.b16 %v1633
    %v1768 = vunpack.c.h.b16 %v1633
    %v1769 = vunpack.c.l.b16 %v1634
    %v1770 = vunpack.c.h.b16 %v1634
    %v1771 = vunpack.c.l.b16 %v1635
    %v1772 = vunpack.c.h.b16 %v1635
    %v1773 = vunpack.c.l.b16 %v1636
    %v1774 = vunpack.c.h.b16 %v1636
    %v1775 = vunpack.c.l.b16 %v1637
    %v1776 = vunpack.c.h.b16 %v1637
    %v1777 = vunpack.c.l.b16 %v1638
    %v1778 = vunpack.c.h.b16 %v1638
    %v1779 = vunpack.c.l.b16 %v1639
    %v1780 = vunpack.c.h.b16 %v1639
    %v1781 = vunpack.c.l.b16 %v1640
    %v1782 = vunpack.c.h.b16 %v1640
    %v1783 = vunpack.c.l.b16 %v1641
    %v1784 = vunpack.c.h.b16 %v1641
    %v1785 = vunpack.c.l.b16 %v1642
    %v1786 = vunpack.c.h.b16 %v1642
    %v1787 = vunpack.c.l.b16 %v1643
    %v1788 = vunpack.c.h.b16 %v1643
    %v1789 = vunpack.c.l.b16 %v1644
    %v1790 = vunpack.c.h.b16 %v1644
    %v1791 = vunpack.c.l.b16 %v1645
    %v1792 = vunpack.c.h.b16 %v1645
    %v1793 = vunpack.c.l.b16 %v1646
    %v1794 = vunpack.c.h.b16 %v1646
    %v1795 = vunpack.c.l.b16 %v1647
    %v1796 = vunpack.c.h.b16 %v1647
    %v1797 = vunpack.c.l.b16 %v1648
    %v1798 = vunpack.c.h.b16 %v1648
    %v1799 = vunpack.c.l.b16 %v1649
    %v1800 = vunpack.c.h.b16 %v1649
    %v1801 = vunpack.c.l.b16 %v1650
    %v1802 = vunpack.c.h.b16 %v1650
    %v1803 = vunpack.c.l.b16 %v1651
    %v1804 = vunpack.c.h.b16 %v1651
    %v1805 = vunpack.c.l.b16 %v1652
    %v1806 = vunpack.c.h.b16 %v1652
    %v1807 = vunpack.c.l.b16 %v1653
    %v1808 = vunpack.c.h.b16 %v1653
    %v1809 = vunpack.c.l.b16 %v1654
    %v1810 = vunpack.c.h.b16 %v1654
    %v1811 = vunpack.c.l.b16 %v1655
    %v1812 = vunpack.c.h.b16 %v1655
    %v1813 = vunpack.c.l.b16 %v1656
    %v1814 = vunpack.c.h.b16 %v1656
    %v1815 = vunpack.c.l.b16 %v1657
    %v1816 = vunpack.c.h.b16 %v1657
    %v1817 = vunpack.c.l.b16 %v1658
    %v1818 = vunpack.c.h.b16 %v1658
    %v1819 = vunpack.c.l.b16 %v1659
    %v1820 = vunpack.c.h.b16 %v1659
    %v1821 = vunpack.c.l.b16 %v1660
    %v1822 = vunpack.c.h.b16 %v1660
    %v1823 = vunpack.c.l.b16 %v1661
    %v1824 = vunpack.c.h.b16 %v1661
    %v1825 = vunpack.c.l.b16 %v1662
    %v1826 = vunpack.c.h.b16 %v1662
    %v1827 = vunpack.c.l.b16 %v1663
    %v1828 = vunpack.c.h.b16 %v1663
    %v1829 = vunpack.c.l.b16 %v1664
    %v1830 = vunpack.c.h.b16 %v1664
    %v1831 = vunpack.c.l.b16 %v1665
    %v1832 = vunpack.c.h.b16 %v1665
    %v1833 = vunpack.c.l.b16 %v1666
    %v1834 = vunpack.c.h.b16 %v1666
    %v1835 = vunpack.c.l.b16 %v1667
    %v1836 = vunpack.c.h.b16 %v1667
    %v1837 = vunpack.c.l.b16 %v1668
    %v1838 = vunpack.c.h.b16 %v1668
    %v1839 = vunpack.c.l.b16 %v1669
    %v1840 = vunpack.c.h.b16 %v1669
    %v1841 = vunpack.c.l.b16 %v1670
    %v1842 = vunpack.c.h.b16 %v1670
    %v1843 = vunpack.c.l.b16 %v1671
    %v1844 = vunpack.c.h.b16 %v1671
    %v1845 = vunpack.c.l.b16 %v1672
    %v1846 = vunpack.c.h.b16 %v1672
    %v1847 = vunpack.c.l.b16 %v1673
    %v1848 = vunpack.c.h.b16 %v1673
    %v1849 = vunpack.c.l.b16 %v1674
    %v1850 = vunpack.c.h.b16 %v1674
    %v1851 = vunpack.c.l.b16 %v1675
    %v1852 = vunpack.c.h.b16 %v1675
    %v1853 = vunpack.c.l.b16 %v1676
    %v1854 = vunpack.c.h.b16 %v1676
    %v1855 = vunpack.c.l.b16 %v1677
    %v1856 = vunpack.c.h.b16 %v1677
    %v1857 = vunpack.c.l.b16 %v1678
    %v1858 = vunpack.c.h.b16 %v1678
    %v1859 = vunpack.c.l.b16 %v1679
    %v1860 = vunpack.c.h.b16 %v1679
    %v1861 = vunpack.c.l.b16 %v1680
    %v1862 = vunpack.c.h.b16 %v1680
    %v1863 = vunpack.c.l.b16 %v1681
    %v1864 = vunpack.c.h.b16 %v1681
    %v1865 = vunpack.c.l.b16 %v1682
    %v1866 = vunpack.c.h.b16 %v1682
    %v1867 = vunpack.c.l.b16 %v1683
    %v1868 = vunpack.c.h.b16 %v1683
    %v1869 = vunpack.c.l.b16 %v1684
    %v1870 = vunpack.c.h.b16 %v1684
    %v1871 = vunpack.c.l.b16 %v1685
    %v1872 = vunpack.c.h.b16 %v1685
    %v1873 = vunpack.c.l.b16 %v1686
    %v1874 = vunpack.c.h.b16 %v1686
    %v1875 = vunpack.c.l.b16 %v1687
    %v1876 = vunpack.c.h.b16 %v1687
    %v1877 = vunpack.c.l.b16 %v1688
    %v1878 = vunpack.c.h.b16 %v1688
    %v1879 = vunpack.c.l.b16 %v1689
    %v1880 = vunpack.c.h.b16 %v1689
    %v1881 = vunpack.c.l.b16 %v1690
    %v1882 = vunpack.c.h.b16 %v1690
    %v1883 = vunpack.c.l.b16 %v1691
    %v1884 = vunpack.c.h.b16 %v1691
    %v1885 = vunpack.c.l.b16 %v1692
    %v1886 = vunpack.c.h.b16 %v1692
    %v1887 = vunpack.c.l.b16 %v1693
    %v1888 = vunpack.c.h.b16 %v1693
    %v1889 = vunpack.c.l.b16 %v1694
    %v1890 = vunpack.c.h.b16 %v1694
    %v1891 = vunpack.c.l.b16 %v1695
    %v1892 = vunpack.c.h.b16 %v1695
    %v1893 = vunpack.c.l.b16 %v1696
    %v1894 = vunpack.c.h.b16 %v1696
    %v1895 = vpack.c.b16 %v1769, %v1767
    %v1896 = vpack.c.b16 %v1770, %v1768
    %v1897 = vpack.c.b16 %v1773, %v1771
    %v1898 = vpack.c.b16 %v1774, %v1772
    %v1899 = vpack.c.b16 %v1777, %v1775
    %v1900 = vpack.c.b16 %v1778, %v1776
    %v1901 = vpack.c.b16 %v1781, %v1779
    %v1902 = vpack.c.b16 %v1782, %v1780
    %v1903 = vpack.c.b16 %v1785, %v1783
    %v1904 = vpack.c.b16 %v1786, %v1784
    %v1905 = vpack.c.b16 %v1789, %v1787
    %v1906 = vpack.c.b16 %v1790, %v1788
    %v1907 = vpack.c.b16 %v1793, %v1791
    %v1908 = vpack.c.b16 %v1794, %v1792
    %v1909 = vpack.c.b16 %v1797, %v1795
    %v1910 = vpack.c.b16 %v1798, %v1796
    %v1911 = vpack.c.b16 %v1801, %v1799
    %v1912 = vpack.c.b16 %v1802, %v1800
    %v1913 = vpack.c.b16 %v1805, %v1803
    %v1914 = vpack.c.b16 %v1806, %v1804
    %v1915 = vpack.c.b16 %v1809, %v1807
    %v1916 = vpack.c.b16 %v1810, %v1808
    %v1917 = vpack.c.b16 %v1813, %v1811
    %v1918 = vpack.c.b16 %v1814, %v1812
    %v1919 = vpack.c.b16 %v1817, %v1815
    %v1920 = vpack.c.b16 %v1818, %v1816
    %v1921 = vpack.c.b16 %v1821, %v1819
    %v1922 = vpack.c.b16 %v1822, %v1820
    %v1923 = vpack.c.b16 %v1825, %v1823
    %v1924 = vpack.c.b16 %v1826, %v1824
    %v1925 = vpack.c.b16 %v1829, %v1827
    %v1926 = vpack.c.b16 %v1830, %v1828
    %v1927 = vpack.c.b16 %v1833, %v1831
    %v1928 = vpack.c.b16 %v1834, %v1832
    %v1929 = vpack.c.b16 %v1837, %v1835
    %v1930 = vpack.c.b16 %v1838, %v1836
    %v1931 = vpack.c.b16 %v1841, %v1839
    %v1932 = vpack.c.b16 %v1842, %v1840
    %v1933 = vpack.c.b16 %v1845, %v1843
    %v1934 = vpack.c.b16 %v1846, %v1844
    %v1935 = vpack.c.b16 %v1849, %v1847
    %v1936 = vpack.c.b16 %v1850, %v1848
    %v1937 = vpack.c.b16 %v1853, %v1851
    %v1938 = vpack.c.b16 %v1854, %v1852
    %v1939 = vpack.c.b16 %v1857, %v1855
    %v1940 = vpack.c.b16 %v1858, %v1856
    %v1941 = vpack.c.b16 %v1861, %v1859
    %v1942 = vpack.c.b16 %v1862, %v1860
    %v1943 = vpack.c.b16 %v1865, %v1863
    %v1944 = vpack.c.b16 %v1866, %v1864
    %v1945 = vpack.c.b16 %v1869, %v1867
    %v1946 = vpack.c.b16 %v1870, %v1868
    %v1947 = vpack.c.b16 %v1873, %v1871
    %v1948 = vpack.c.b16 %v1874, %v1872
    %v1949 = vpack.c.b16 %v1877, %v1875
    %v1950 = vpack.c.b16 %v1878, %v1876
    %v1951 = vpack.c.b16 %v1881, %v1879
    %v1952 = vpack.c.b16 %v1882, %v1880
    %v1953 = vpack.c.b16 %v1885, %v1883
    %v1954 = vpack.c.b16 %v1886, %v1884
    %v1955 = vpack.c.b16 %v1889, %v1887
    %v1956 = vpack.c.b16 %v1890, %v1888
    %v1957 = vpack.c.b16 %v1893, %v1891
    %v1958 = vpack.c.b16 %v1894, %v1892
    %2023 = vmatpush.bf16.msra.mxu0 %v1909
    %2024 = vmatpush.bf16.msra.mxu0 %v1907
    %2025 = vmatpush.bf16.msra.mxu0 %v1905
    %2026 = vmatpush.bf16.msra.mxu0 %v1903
    %2027 = vmatpush.bf16.msra.mxu0 %v1901
    %2028 = vmatpush.bf16.msra.mxu0 %v1899
    %2029 = vmatpush.bf16.msra.mxu0 %v1897
    %2030 = vmatpush.bf16.msra.mxu0 %v1895
    %2031 = vmatmul.bf16.gmra.mxu0 %v249
    %v2032 = vpop.f32.mrf.mxu0
    %v2033 = vadd.f32 %v1699, %v2032
    %v2034 = vpop.f32.mrf.mxu0
    %v2035 = vadd.f32 %v1699, %v2034
    %2036 = vdwg.mxu0
    %2037 = vmatpush.bf16.msra.mxu0 %v1925
    %2038 = vmatpush.bf16.msra.mxu0 %v1923
    %2039 = vmatpush.bf16.msra.mxu0 %v1921
    %2040 = vmatpush.bf16.msra.mxu0 %v1919
    %2041 = vmatpush.bf16.msra.mxu0 %v1917
    %2042 = vmatpush.bf16.msra.mxu0 %v1915
    %2043 = vmatpush.bf16.msra.mxu0 %v1913
    %2044 = vmatpush.bf16.msra.mxu0 %v1911
    %2045 = vmatmul.bf16.gmra.mxu0 %v250
    %v2046 = vpop.f32.mrf.mxu0
    %v2047 = vadd.f32 %v2033, %v2046
    %v2048 = vpop.f32.mrf.mxu0
    %v2049 = vadd.f32 %v2035, %v2048
    %2050 = vdwg.mxu0
    %2051 = vmatpush.bf16.msra.mxu0 %v1941
    %2052 = vmatpush.bf16.msra.mxu0 %v1939
    %2053 = vmatpush.bf16.msra.mxu0 %v1937
    %2054 = vmatpush.bf16.msra.mxu0 %v1935
    %2055 = vmatpush.bf16.msra.mxu0 %v1933
    %2056 = vmatpush.bf16.msra.mxu0 %v1931
    %2057 = vmatpush.bf16.msra.mxu0 %v1929
    %2058 = vmatpush.bf16.msra.mxu0 %v1927
    %2059 = vmatmul.bf16.gmra.mxu0 %v251
    %v2060 = vpop.f32.mrf.mxu0
    %v2061 = vadd.f32 %v2047, %v2060
    %v2062 = vpop.f32.mrf.mxu0
    %v2063 = vadd.f32 %v2049, %v2062
    %2064 = vdwg.mxu0
    %2065 = vmatpush.bf16.msra.mxu0 %v1957
    %2066 = vmatpush.bf16.msra.mxu0 %v1955
    %2067 = vmatpush.bf16.msra.mxu0 %v1953
    %2068 = vmatpush.bf16.msra.mxu0 %v1951
    %2069 = vmatpush.bf16.msra.mxu0 %v1949
    %2070 = vmatpush.bf16.msra.mxu0 %v1947
    %2071 = vmatpush.bf16.msra.mxu0 %v1945
    %2072 = vmatpush.bf16.msra.mxu0 %v1943
    %2073 = vmatmul.bf16.gmra.mxu0 %v252
    %v2074 = vpop.f32.mrf.mxu0
    %v2075 = vadd.f32 %v2061, %v2074
    %v2076 = vpop.f32.mrf.mxu0
    %v2077 = vadd.f32 %v2063, %v2076
    %2078 = vdwg.mxu0
    %2079 = vmatpush.bf16.msra.mxu0 %v1910
    %2080 = vmatpush.bf16.msra.mxu0 %v1908
    %2081 = vmatpush.bf16.msra.mxu0 %v1906
    %2082 = vmatpush.bf16.msra.mxu0 %v1904
    %2083 = vmatpush.bf16.msra.mxu0 %v1902
    %2084 = vmatpush.bf16.msra.mxu0 %v1900
    %2085 = vmatpush.bf16.msra.mxu0 %v1898
    %2086 = vmatpush.bf16.msra.mxu0 %v1896
    %2087 = vmatmul.bf16.gmra.mxu0 %v249
    %v2088 = vpop.f32.mrf.mxu0
    %v2089 = vadd.f32 %v1700, %v2088
    %v2090 = vpop.f32.mrf.mxu0
    %v2091 = vadd.f32 %v1700, %v2090
    %2092 = vdwg.mxu0
    %2093 = vmatpush.bf16.msra.mxu0 %v1926
    %2094 = vmatpush.bf16.msra.mxu0 %v1924
    %2095 = vmatpush.bf16.msra.mxu0 %v1922
    %2096 = vmatpush.bf16.msra.mxu0 %v1920
    %2097 = vmatpush.bf16.msra.mxu0 %v1918
    %2098 = vmatpush.bf16.msra.mxu0 %v1916
    %2099 = vmatpush.bf16.msra.mxu0 %v1914
    %2100 = vmatpush.bf16.msra.mxu0 %v1912
    %2101 = vmatmul.bf16.gmra.mxu0 %v250
    %v2102 = vpop.f32.mrf.mxu0
    %v2103 = vadd.f32 %v2089, %v2102
    %v2104 = vpop.f32.mrf.mxu0
    %v2105 = vadd.f32 %v2091, %v2104
    %2106 = vdwg.mxu0
    %2107 = vmatpush.bf16.msra.mxu0 %v1942
    %2108 = vmatpush.bf16.msra.mxu0 %v1940
    %2109 = vmatpush.bf16.msra.mxu0 %v1938
    %2110 = vmatpush.bf16.msra.mxu0 %v1936
    %2111 = vmatpush.bf16.msra.mxu0 %v1934
    %2112 = vmatpush.bf16.msra.mxu0 %v1932
    %2113 = vmatpush.bf16.msra.mxu0 %v1930
    %2114 = vmatpush.bf16.msra.mxu0 %v1928
    %2115 = vmatmul.bf16.gmra.mxu0 %v251
    %v2116 = vpop.f32.mrf.mxu0
    %v2117 = vadd.f32 %v2103, %v2116
    %v2118 = vpop.f32.mrf.mxu0
    %v2119 = vadd.f32 %v2105, %v2118
    %2120 = vdwg.mxu0
    %2121 = vmatpush.bf16.msra.mxu0 %v1958
    %2122 = vmatpush.bf16.msra.mxu0 %v1956
    %2123 = vmatpush.bf16.msra.mxu0 %v1954
    %2124 = vmatpush.bf16.msra.mxu0 %v1952
    %2125 = vmatpush.bf16.msra.mxu0 %v1950
    %2126 = vmatpush.bf16.msra.mxu0 %v1948
    %2127 = vmatpush.bf16.msra.mxu0 %v1946
    %2128 = vmatpush.bf16.msra.mxu0 %v1944
    %2129 = vmatmul.bf16.gmra.mxu0 %v252
    %v2130 = vpop.f32.mrf.mxu0
    %v2131 = vadd.f32 %v2117, %v2130
    %v2132 = vpop.f32.mrf.mxu0
    %v2133 = vadd.f32 %v2119, %v2132
    %2134 = vdwg.mxu0
    %v2135 = vmax.f32 %v2075, 0.0
    %v2136 = vmax.f32 %v2131, 0.0
    %v2137 = vmax.f32 %v2077, 0.0
    %v2138 = vmax.f32 %v2133, 0.0
    %v2139 = vpack.c.bf16 %v1631, %v1629
    %v2140 = vpack.c.bf16 %v1632, %v1630
    %v2141 = vld [vmem:[#allocation13] sm:$0xf]
    %v2142 = vld [vmem:[#allocation13 + $0x4] sm:$0xf]
    %v2143 = vld [vmem:[#allocation13 + $0x8] sm:$0xf]
    %v2144 = vld [vmem:[#allocation13 + $0xc] sm:$0xf]
    %v2145 = vld [vmem:[#allocation13 + $0x10] sm:$0xf]
    %v2146 = vld [vmem:[#allocation13 + $0x14] sm:$0xf]
    %v2147 = vld [vmem:[#allocation13 + $0x18] sm:$0xf]
    %v2148 = vld [vmem:[#allocation13 + $0x1c] sm:$0xf]
    %v2149 = vld [vmem:[#allocation13 + $0x20] sm:$0xf]
    %v2150 = vld [vmem:[#allocation13 + $0x24] sm:$0xf]
    %v2151 = vld [vmem:[#allocation13 + $0x28] sm:$0xf]
    %v2152 = vld [vmem:[#allocation13 + $0x2c] sm:$0xf]
    %v2153 = vld [vmem:[#allocation13 + $0x30] sm:$0xf]
    %v2154 = vld [vmem:[#allocation13 + $0x34] sm:$0xf]
    %v2155 = vld [vmem:[#allocation13 + $0x38] sm:$0xf]
    %v2156 = vld [vmem:[#allocation13 + $0x3c] sm:$0xf]
    %v2157 = vld [vmem:[#allocation13 + $0x40] sm:$0xf]
    %v2158 = vld [vmem:[#allocation13 + $0x44] sm:$0xf]
    %v2159 = vld [vmem:[#allocation13 + $0x48] sm:$0xf]
    %v2160 = vld [vmem:[#allocation13 + $0x4c] sm:$0xf]
    %v2161 = vld [vmem:[#allocation13 + $0x50] sm:$0xf]
    %v2162 = vld [vmem:[#allocation13 + $0x54] sm:$0xf]
    %v2163 = vld [vmem:[#allocation13 + $0x58] sm:$0xf]
    %v2164 = vld [vmem:[#allocation13 + $0x5c] sm:$0xf]
    %v2165 = vld [vmem:[#allocation13 + $0x60] sm:$0xf]
    %v2166 = vld [vmem:[#allocation13 + $0x64] sm:$0xf]
    %v2167 = vld [vmem:[#allocation13 + $0x68] sm:$0xf]
    %v2168 = vld [vmem:[#allocation13 + $0x6c] sm:$0xf]
    %v2169 = vld [vmem:[#allocation13 + $0x70] sm:$0xf]
    %v2170 = vld [vmem:[#allocation13 + $0x74] sm:$0xf]
    %v2171 = vld [vmem:[#allocation13 + $0x78] sm:$0xf]
    %v2172 = vld [vmem:[#allocation13 + $0x7c] sm:$0xf]
    %v2173 = vpack.c.bf16 %v2137, %v2135
    %v2174 = vpack.c.bf16 %v2138, %v2136
    %v2175 = vld [vmem:[#allocation14] sm:$0xf]
    %v2176 = vld [vmem:[#allocation14 + $0x4] sm:$0xf]
    %v2177 = vld [vmem:[#allocation14 + $0x8] sm:$0xf]
    %v2178 = vld [vmem:[#allocation14 + $0xc] sm:$0xf]
    %v2179 = vld [vmem:[#allocation14 + $0x10] sm:$0xf]
    %v2180 = vld [vmem:[#allocation14 + $0x14] sm:$0xf]
    %v2181 = vld [vmem:[#allocation14 + $0x18] sm:$0xf]
    %v2182 = vld [vmem:[#allocation14 + $0x1c] sm:$0xf]
    %v2183 = vld [vmem:[#allocation14 + $0x20] sm:$0xf]
    %v2184 = vld [vmem:[#allocation14 + $0x24] sm:$0xf]
    %v2185 = vld [vmem:[#allocation14 + $0x28] sm:$0xf]
    %v2186 = vld [vmem:[#allocation14 + $0x2c] sm:$0xf]
    %v2187 = vld [vmem:[#allocation14 + $0x30] sm:$0xf]
    %v2188 = vld [vmem:[#allocation14 + $0x34] sm:$0xf]
    %v2189 = vld [vmem:[#allocation14 + $0x38] sm:$0xf]
    %v2190 = vld [vmem:[#allocation14 + $0x3c] sm:$0xf]
    %v2191 = vld [vmem:[#allocation14 + $0x40] sm:$0xf]
    %v2192 = vld [vmem:[#allocation14 + $0x44] sm:$0xf]
    %v2193 = vld [vmem:[#allocation14 + $0x48] sm:$0xf]
    %v2194 = vld [vmem:[#allocation14 + $0x4c] sm:$0xf]
    %v2195 = vld [vmem:[#allocation14 + $0x50] sm:$0xf]
    %v2196 = vld [vmem:[#allocation14 + $0x54] sm:$0xf]
    %v2197 = vld [vmem:[#allocation14 + $0x58] sm:$0xf]
    %v2198 = vld [vmem:[#allocation14 + $0x5c] sm:$0xf]
    %v2199 = vld [vmem:[#allocation14 + $0x60] sm:$0xf]
    %v2200 = vld [vmem:[#allocation14 + $0x64] sm:$0xf]
    %v2201 = vld [vmem:[#allocation14 + $0x68] sm:$0xf]
    %v2202 = vld [vmem:[#allocation14 + $0x6c] sm:$0xf]
    %v2203 = vld [vmem:[#allocation14 + $0x70] sm:$0xf]
    %v2204 = vld [vmem:[#allocation14 + $0x74] sm:$0xf]
    %v2205 = vld [vmem:[#allocation14 + $0x78] sm:$0xf]
    %v2206 = vld [vmem:[#allocation14 + $0x7c] sm:$0xf]
    %v2239 = vunpack.c.l.b16 %v2175
    %v2240 = vunpack.c.l.b16 %v2176
    %v2241 = vunpack.c.l.b16 %v2177
    %v2242 = vunpack.c.l.b16 %v2178
    %v2243 = vunpack.c.l.b16 %v2179
    %v2244 = vunpack.c.l.b16 %v2180
    %v2245 = vunpack.c.l.b16 %v2181
    %v2246 = vunpack.c.l.b16 %v2182
    %v2247 = vunpack.c.l.b16 %v2183
    %v2248 = vunpack.c.l.b16 %v2184
    %v2249 = vunpack.c.l.b16 %v2185
    %v2250 = vunpack.c.l.b16 %v2186
    %v2251 = vunpack.c.l.b16 %v2187
    %v2252 = vunpack.c.l.b16 %v2188
    %v2253 = vunpack.c.l.b16 %v2189
    %v2254 = vunpack.c.l.b16 %v2190
    %v2255 = vunpack.c.l.b16 %v2191
    %v2256 = vunpack.c.l.b16 %v2192
    %v2257 = vunpack.c.l.b16 %v2193
    %v2258 = vunpack.c.l.b16 %v2194
    %v2259 = vunpack.c.l.b16 %v2195
    %v2260 = vunpack.c.l.b16 %v2196
    %v2261 = vunpack.c.l.b16 %v2197
    %v2262 = vunpack.c.l.b16 %v2198
    %v2263 = vunpack.c.l.b16 %v2199
    %v2264 = vunpack.c.l.b16 %v2200
    %v2265 = vunpack.c.l.b16 %v2201
    %v2266 = vunpack.c.l.b16 %v2202
    %v2267 = vunpack.c.l.b16 %v2203
    %v2268 = vunpack.c.l.b16 %v2204
    %v2269 = vunpack.c.l.b16 %v2205
    %v2270 = vunpack.c.l.b16 %v2206
    %v2271 = vpack.c.b16 %v2240, %v2239
    %v2272 = vpack.c.b16 %v2242, %v2241
    %v2273 = vpack.c.b16 %v2244, %v2243
    %v2274 = vpack.c.b16 %v2246, %v2245
    %v2275 = vpack.c.b16 %v2248, %v2247
    %v2276 = vpack.c.b16 %v2250, %v2249
    %v2277 = vpack.c.b16 %v2252, %v2251
    %v2278 = vpack.c.b16 %v2254, %v2253
    %v2279 = vpack.c.b16 %v2256, %v2255
    %v2280 = vpack.c.b16 %v2258, %v2257
    %v2281 = vpack.c.b16 %v2260, %v2259
    %v2282 = vpack.c.b16 %v2262, %v2261
    %v2283 = vpack.c.b16 %v2264, %v2263
    %v2284 = vpack.c.b16 %v2266, %v2265
    %v2285 = vpack.c.b16 %v2268, %v2267
    %v2286 = vpack.c.b16 %v2270, %v2269
    %2303 = vmatpush.bf16.msra.mxu0 %v2278
    %2304 = vmatpush.bf16.msra.mxu0 %v2277
    %2305 = vmatpush.bf16.msra.mxu0 %v2276
    %2306 = vmatpush.bf16.msra.mxu0 %v2275
    %2307 = vmatpush.bf16.msra.mxu0 %v2274
    %2308 = vmatpush.bf16.msra.mxu0 %v2273
    %2309 = vmatpush.bf16.msra.mxu0 %v2272
    %2310 = vmatpush.bf16.msra.mxu0 %v2271
    %2311 = vmatmul.bf16.gmra.mxu0 %v2173
    %v2312 = vpop.f32.mrf.mxu0
    %v2313 = vadd.f32 0.0, %v2312
    %v2314 = vpop.f32.mrf.mxu0
    %v2315 = vadd.f32 0.0, %v2314
    %2316 = vdwg.mxu0
    %2317 = vmatpush.bf16.msra.mxu0 %v2286
    %2318 = vmatpush.bf16.msra.mxu0 %v2285
    %2319 = vmatpush.bf16.msra.mxu0 %v2284
    %2320 = vmatpush.bf16.msra.mxu0 %v2283
    %2321 = vmatpush.bf16.msra.mxu0 %v2282
    %2322 = vmatpush.bf16.msra.mxu0 %v2281
    %2323 = vmatpush.bf16.msra.mxu0 %v2280
    %2324 = vmatpush.bf16.msra.mxu0 %v2279
    %2325 = vmatmul.bf16.gmra.mxu0 %v2174
    %v2326 = vpop.f32.mrf.mxu0
    %v2327 = vadd.f32 %v2313, %v2326
    %v2328 = vpop.f32.mrf.mxu0
    %v2329 = vadd.f32 %v2315, %v2328
    %2330 = vdwg.mxu0
    %v2363 = vunpack.c.l.b16 %v2141
    %v2364 = vunpack.c.l.b16 %v2142
    %v2365 = vunpack.c.l.b16 %v2143
    %v2366 = vunpack.c.l.b16 %v2144
    %v2367 = vunpack.c.l.b16 %v2145
    %v2368 = vunpack.c.l.b16 %v2146
    %v2369 = vunpack.c.l.b16 %v2147
    %v2370 = vunpack.c.l.b16 %v2148
    %v2371 = vunpack.c.l.b16 %v2149
    %v2372 = vunpack.c.l.b16 %v2150
    %v2373 = vunpack.c.l.b16 %v2151
    %v2374 = vunpack.c.l.b16 %v2152
    %v2375 = vunpack.c.l.b16 %v2153
    %v2376 = vunpack.c.l.b16 %v2154
    %v2377 = vunpack.c.l.b16 %v2155
    %v2378 = vunpack.c.l.b16 %v2156
    %v2379 = vunpack.c.l.b16 %v2157
    %v2380 = vunpack.c.l.b16 %v2158
    %v2381 = vunpack.c.l.b16 %v2159
    %v2382 = vunpack.c.l.b16 %v2160
    %v2383 = vunpack.c.l.b16 %v2161
    %v2384 = vunpack.c.l.b16 %v2162
    %v2385 = vunpack.c.l.b16 %v2163
    %v2386 = vunpack.c.l.b16 %v2164
    %v2387 = vunpack.c.l.b16 %v2165
    %v2388 = vunpack.c.l.b16 %v2166
    %v2389 = vunpack.c.l.b16 %v2167
    %v2390 = vunpack.c.l.b16 %v2168
    %v2391 = vunpack.c.l.b16 %v2169
    %v2392 = vunpack.c.l.b16 %v2170
    %v2393 = vunpack.c.l.b16 %v2171
    %v2394 = vunpack.c.l.b16 %v2172
    %v2395 = vpack.c.b16 %v2364, %v2363
    %v2396 = vpack.c.b16 %v2366, %v2365
    %v2397 = vpack.c.b16 %v2368, %v2367
    %v2398 = vpack.c.b16 %v2370, %v2369
    %v2399 = vpack.c.b16 %v2372, %v2371
    %v2400 = vpack.c.b16 %v2374, %v2373
    %v2401 = vpack.c.b16 %v2376, %v2375
    %v2402 = vpack.c.b16 %v2378, %v2377
    %v2403 = vpack.c.b16 %v2380, %v2379
    %v2404 = vpack.c.b16 %v2382, %v2381
    %v2405 = vpack.c.b16 %v2384, %v2383
    %v2406 = vpack.c.b16 %v2386, %v2385
    %v2407 = vpack.c.b16 %v2388, %v2387
    %v2408 = vpack.c.b16 %v2390, %v2389
    %v2409 = vpack.c.b16 %v2392, %v2391
    %v2410 = vpack.c.b16 %v2394, %v2393
    %2427 = vmatpush.bf16.msra.mxu0 %v2402
    %2428 = vmatpush.bf16.msra.mxu0 %v2401
    %2429 = vmatpush.bf16.msra.mxu0 %v2400
    %2430 = vmatpush.bf16.msra.mxu0 %v2399
    %2431 = vmatpush.bf16.msra.mxu0 %v2398
    %2432 = vmatpush.bf16.msra.mxu0 %v2397
    %2433 = vmatpush.bf16.msra.mxu0 %v2396
    %2434 = vmatpush.bf16.msra.mxu0 %v2395
    %2435 = vmatmul.bf16.gmra.mxu0 %v2139
    %v2436 = vpop.f32.mrf.mxu0
    %v2437 = vadd.f32 %v2327, %v2436
    %v2438 = vpop.f32.mrf.mxu0
    %v2439 = vadd.f32 %v2329, %v2438
    %2440 = vdwg.mxu0
    %2441 = vmatpush.bf16.msra.mxu0 %v2410
    %2442 = vmatpush.bf16.msra.mxu0 %v2409
    %2443 = vmatpush.bf16.msra.mxu0 %v2408
    %2444 = vmatpush.bf16.msra.mxu0 %v2407
    %2445 = vmatpush.bf16.msra.mxu0 %v2406
    %2446 = vmatpush.bf16.msra.mxu0 %v2405
    %2447 = vmatpush.bf16.msra.mxu0 %v2404
    %2448 = vmatpush.bf16.msra.mxu0 %v2403
    %2449 = vmatmul.bf16.gmra.mxu0 %v2140
    %v2450 = vpop.f32.mrf.mxu0
    %v2451 = vadd.f32 %v2437, %v2450
    %v2452 = vpop.f32.mrf.mxu0
    %v2453 = vadd.f32 %v2439, %v2452
    %2454 = vdwg.mxu0
    %v2455 = vld [vmem:[%s13] sm:$0x1]
    %v2457 = vperm.slane %v2455, 0
    %v2459 = vadd.f32 %v2451, %v2457
    %v2460 = vadd.f32 %v2453, %v2457
    %v2461 = vpack.c.bf16 %v2459, %v2459
    %v2462 = vpack.c.bf16 %v2460, %v2460
    %2463 = vst [vmem:[#allocation16] sm:$0xf] %v2461
    %2464 = vst [vmem:[#allocation16 + $0x4] sm:$0xf] %v2462
    // Predicated region
    $region90: #{tpu_custom_call.1} parent=1 // pred_check
      _
    $region91: #{tpu_custom_call.1} parent=1 // pred_check_branch
      %2466 = sbr.rel (0) target = $region93
    $region92: #{tpu_custom_call.1} parent=1 // pred_region
      %2468 = vsyncadd [#allocation4], 0
      %s2469 = sshll.u32 [#allocation16], 4
      %s2470 = int_to_ptr.vmem [resolvable:$true] %s2469
      %s2471 = sshll.u32 %s14, 4
      %s2472 = int_to_ptr.hbm [resolvable:$true] %s2471
      %2477 = dma.vmem_to_hbm [thread:$0]  %s2470, 128, %s2472, [#allocation4], 64, 64, 4
    $region93: #{tpu_custom_call.1} parent=1 // pred_fallthru
      _
    // Predicated region
    $region94: #{tpu_custom_call.1} parent=1 // pred_check
      _
    $region95: #{tpu_custom_call.1} parent=1 // pred_check_branch
      %2479 = sbr.rel (0) target = $region97
    $region96: #{tpu_custom_call.1} parent=1 // pred_region
      %2481 = dma.done [#allocation4], 128
    $region97: #{tpu_custom_call.1} parent=1 // pred_fallthru
      _
    %2482 = vsyncpa [#allocation3], 1
    %2483 = vsyncpa [#allocation6], 1
    %2484 = vsyncpa [#allocation9], 1
    %2485 = vsyncpa [#allocation12], 1
    %2486 = vsyncpa [#allocation15], 1
    %2487 = vsyncpa [#allocation4], 1

</llo_original>
